<compile_context>
chip_gen: v6e
topology: v6e:2x2x1
jax: 0.10.0
libtpu: 0.0.40
codegen_flags: <defaults>
</compile_context>

<pallas_src>
import functools

import jax
import jax.numpy as jnp
from jax.experimental import pallas as pl
from jax.experimental.pallas import tpu as pltpu

LANE = 128


def conv_im2col_kernel(x_ref, w_ref, conv_ref, stats_ref, *,
                       TH, H, H_pad, W, KH, KW, dH, dW, C_in, C_pad):
    # x_ref:     (1, H_pad + 2*pH, W + 2*pW, C_in)   whole padded image (revisited)
    # w_ref:     (KH*KW*C_in, C_pad)                 repacked weights, zero-padded C_out
    # conv_ref:  (1, TH, W, C_pad)                   conv output tile (lane dense)
    # stats_ref: (1, 1, 2, C_pad)                    per-tile [sum, sum_sq] over valid rows
    ht = pl.program_id(1)
    row0 = ht * TH
    TM = TH * W

    # im2col: gather the KH*KW taps for this row tile, one K = KH*KW*C_in matmul.
    taps = []
    for kh in range(KH):
        for kw in range(KW):
            t = x_ref[0, pl.ds(row0 + kh * dH, TH), pl.ds(kw * dW, W), :]
            taps.append(t.reshape(TM, C_in))
    col = jnp.concatenate(taps, axis=-1).astype(jnp.float32)          # (TM, KH*KW*C_in)
    acc = jnp.dot(col, w_ref[...], preferred_element_type=jnp.float32)  # (TM, C_pad)

    # One-pass batch statistics (sum, sum of squares) over valid rows only.
    if H_pad == H:
        masked = acc
    else:
        m_idx = jax.lax.broadcasted_iota(jnp.int32, (TM, 1), 0)
        valid = (row0 + m_idx // W) < H
        masked = jnp.where(valid, acc, 0.0)
    s = jnp.sum(masked, axis=0, keepdims=True)                         # (1, C_pad)
    ss = jnp.sum(masked * acc, axis=0, keepdims=True)                  # (1, C_pad)

    conv_ref[...] = acc.reshape(1, TH, W, C_pad)
    stats_ref[...] = jnp.concatenate([s, ss], axis=0).reshape(1, 1, 2, C_pad)


def bn_relu_kernel(y_ref, scale_ref, shift_ref, o_ref):
    # Fused BN affine + ReLU: y = max(conv * scale + shift, 0)
    o_ref[...] = jnp.maximum(y_ref[...] * scale_ref[...] + shift_ref[...], 0.0)


def conv2d_block_forward(x_nchw, weight_oihw, bias, gamma, beta,
                         dilation=(1, 1), eps=1e-5):
    """Forward of Conv2dBlock.  x_nchw: (N, C_in, H, W) -> (N, C_out, H, W)."""
    del bias  # conv bias is exactly cancelled by training-mode BN mean subtraction
    N, C_in, H, W = x_nchw.shape
    C_out, _, KH, KW = weight_oihw.shape
    dH, dW = dilation
    pH = dH * (KH - 1) // 2
    pW = dW * (KW - 1) // 2
    assert 2 * pH == dH * (KH - 1) and 2 * pW == dW * (KW - 1), \
        "only odd effective kernels give 'same' output size here"

    C_pad = ((C_out + LANE - 1) // LANE) * LANE          # lane-dense channel axis

    # Row tiling of H: aim for ~128 rows of the (rows, C) view per tile.
    TH = max(1, min(H, max(1, 128 // W)))
    n_ht = -(-H // TH)
    H_pad = n_ht * TH
    Hp_tot = H_pad + 2 * pH
    Wp = W + 2 * pW

    # ---- plain-JAX glue: layout change, zero pad, weight repack ----
    x = jnp.transpose(x_nchw, (0, 2, 3, 1))                                  # NHWC
    xp = jnp.pad(x, ((0, 0), (pH, pH + (H_pad - H)), (pW, pW), (0, 0)))
    w = jnp.transpose(weight_oihw, (2, 3, 1, 0)).reshape(KH * KW * C_in, C_out)
    w = jnp.pad(w, ((0, 0), (0, C_pad - C_out))).astype(jnp.float32)

    kernel1 = functools.partial(
        conv_im2col_kernel, TH=TH, H=H, H_pad=H_pad, W=W, KH=KH, KW=KW,
        dH=dH, dW=dW, C_in=C_in, C_pad=C_pad)

    # ---- phase 1: conv + per-tile stats ----
    conv_out, stats = pl.pallas_call(
        kernel1,
        out_shape=(
            jax.ShapeDtypeStruct((N, H_pad, W, C_pad), jnp.float32),
            jax.ShapeDtypeStruct((N, n_ht, 2, C_pad), jnp.float32),
        ),
        grid=(N, n_ht),
        in_specs=[
            pl.BlockSpec((1, Hp_tot, Wp, C_in), lambda n, t: (n, 0, 0, 0)),
            pl.BlockSpec((KH * KW * C_in, C_pad), lambda n, t: (0, 0)),
        ],
        out_specs=(
            pl.BlockSpec((1, TH, W, C_pad), lambda n, t: (n, t, 0, 0)),
            pl.BlockSpec((1, 1, 2, C_pad), lambda n, t: (n, t, 0, 0)),
        ),
        compiler_params=pltpu.CompilerParams(
            dimension_semantics=("parallel", "arbitrary"),
            vmem_limit_bytes=32 * 1024 * 1024),
    )(xp, w)

    # ---- glue: reduce per-tile stats -> fused per-channel scale/shift ----
    count = jnp.float32(N * H * W)
    sums = jnp.sum(stats[:, :, 0, :], axis=(0, 1))                    # (C_pad,)
    sqs = jnp.sum(stats[:, :, 1, :], axis=(0, 1))                     # (C_pad,)
    mean = sums / count
    var = jnp.maximum(sqs / count - mean * mean, 0.0)                 # biased variance
    inv_std = jax.lax.rsqrt(var + eps)
    g = jnp.pad(gamma.astype(jnp.float32), (0, C_pad - C_out))
    b = jnp.pad(beta.astype(jnp.float32), (0, C_pad - C_out))
    scale = (g * inv_std).reshape(1, C_pad)
    shift = (b - mean * g * inv_std).reshape(1, C_pad)

    # ---- phase 2: normalize + ReLU (lane-dense, fully parallel) ----
    M_total = N * H_pad * W
    conv_flat = conv_out.reshape(M_total, C_pad)
    TM2 = TH * W
    while TM2 * 2 <= 1024 and M_total % (TM2 * 2) == 0:
        TM2 *= 2
    y_flat = pl.pallas_call(
        bn_relu_kernel,
        out_shape=jax.ShapeDtypeStruct((M_total, C_pad), jnp.float32),
        grid=(M_total // TM2,),
        in_specs=[
            pl.BlockSpec((TM2, C_pad), lambda i: (i, 0)),
            pl.BlockSpec((1, C_pad), lambda i: (0, 0)),
            pl.BlockSpec((1, C_pad), lambda i: (0, 0)),
        ],
        out_specs=pl.BlockSpec((TM2, C_pad), lambda i: (i, 0)),
        compiler_params=pltpu.CompilerParams(
            dimension_semantics=("parallel",),
            vmem_limit_bytes=32 * 1024 * 1024),
    )(conv_flat, scale, shift)

    y = y_flat.reshape(N, H_pad, W, C_pad)[:, :H, :, :C_out]
    return jnp.transpose(y, (0, 3, 1, 2))                             # back to NCHW


def ref_forward(x_nchw, weight_oihw, bias, gamma, beta,
                dilation=(1, 1), eps=1e-5):
    """Pure-JAX reference (XLA conv) for correctness checking."""
    KH, KW = weight_oihw.shape[2], weight_oihw.shape[3]
    dH, dW = dilation
    pH = dH * (KH - 1) // 2
    pW = dW * (KW - 1) // 2
    y = jax.lax.conv_general_dilated(
        x_nchw, weight_oihw, window_strides=(1, 1),
        padding=((pH, pH), (pW, pW)), rhs_dilation=dilation,
        dimension_numbers=("NCHW", "OIHW", "NCHW"))
    y = y + bias[None, :, None, None]
    mean = jnp.mean(y, axis=(0, 2, 3), keepdims=True)
    var = jnp.mean((y - mean) ** 2, axis=(0, 2, 3), keepdims=True)
    y = (y - mean) / jnp.sqrt(var + eps)
    y = y * gamma[None, :, None, None] + beta[None, :, None, None]
    return jnp.maximum(y, 0.0)


if __name__ == "__main__":
    key = jax.random.PRNGKey(0)
    k_x, k_w, k_b = jax.random.split(key, 3)

    # Small shapes consistent with the module (x is N x C x F x T, NCHW).
    N, C_in, H, W = 2, 4, 16, 16
    C_out, KH, KW = 8, 5, 5

    x = jax.random.normal(k_x, (N, C_in, H, W), dtype=jnp.float32)

    fan_in = C_in * KH * KW
    bound = 1.0 / (fan_in ** 0.5)
    weight = jax.random.uniform(k_w, (C_out, C_in, KH, KW), jnp.float32,
                                -bound, bound)
    bias = jax.random.uniform(k_b, (C_out,), jnp.float32, -bound, bound)
    gamma = jnp.ones((C_out,), jnp.float32)   # BatchNorm2d default affine init
    beta = jnp.zeros((C_out,), jnp.float32)

    fwd = jax.jit(conv2d_block_forward)
    out = jax.block_until_ready(fwd(x, weight, bias, gamma, beta))

    assert out.shape == (N, C_out, H, W), out.shape
    ref = ref_forward(x, weight, bias, gamma, beta)
    max_err = float(jnp.max(jnp.abs(out - ref)))
    assert max_err < 1e-4, f"mismatch vs reference: {max_err}"

    print("KERNEL_OK")
</pallas_src>

<mosaic_0001>
module attributes {stable_mosaic.version = 11 : i64} {
  func.func @conv_im2col_kernel(%arg0: i32, %arg1: i32, %arg2: memref<1x20x20x4xf32, #tpu.memory_space<vmem>>, %arg3: memref<100x128xf32, #tpu.memory_space<vmem>>, %arg4: memref<1x8x16x128xf32, #tpu.memory_space<vmem>>, %arg5: memref<1x1x2x128xf32, #tpu.memory_space<vmem>>) attributes {dimension_semantics = [#tpu.dimension_semantics<parallel>, #tpu.dimension_semantics<arbitrary>], iteration_bounds = array<i64: 2, 2>, scalar_prefetch = 0 : i64, scratch_operands = 0 : i64, tpu.core_type = #tpu.core_type<tc>, window_params = [{transform_indices = @transform_0, window_bounds = array<i64: 1, 20, 20, 4>}, {pipeline_mode = #tpu.pipeline_mode<synchronous>, transform_indices = @transform_1, window_bounds = array<i64: 100, 128>}, {transform_indices = @transform_2, window_bounds = array<i64: 1, 8, 16, 128>}, {transform_indices = @transform_3, window_bounds = array<i64: 1, 1, 2, 128>}]} {
    %c8_i32 = arith.constant 8 : i32
    %0 = arith.muli %arg1, %c8_i32 : i32
    %c0_i32 = arith.constant 0 : i32
    %1 = arith.addi %0, %c0_i32 : i32
    %c0 = arith.constant 0 : index
    %2 = arith.index_cast %1 : i32 to index
    %c0_0 = arith.constant 0 : index
    %c0_1 = arith.constant 0 : index
    %3 = vector.load %arg2[%c0, %2, %c0_0, %c0_1] : memref<1x20x20x4xf32, #tpu.memory_space<vmem>>, vector<1x8x16x4xf32>
    %4 = vector.shape_cast %3 : vector<1x8x16x4xf32> to vector<8x16x4xf32>
    %5 = vector.shape_cast %4 : vector<8x16x4xf32> to vector<128x4xf32>
    %c0_i32_2 = arith.constant 0 : i32
    %6 = arith.addi %0, %c0_i32_2 : i32
    %c0_3 = arith.constant 0 : index
    %7 = arith.index_cast %6 : i32 to index
    %c1 = arith.constant 1 : index
    %c0_4 = arith.constant 0 : index
    %8 = vector.load %arg2[%c0_3, %7, %c1, %c0_4] : memref<1x20x20x4xf32, #tpu.memory_space<vmem>>, vector<1x8x16x4xf32>
    %9 = vector.shape_cast %8 : vector<1x8x16x4xf32> to vector<8x16x4xf32>
    %10 = vector.shape_cast %9 : vector<8x16x4xf32> to vector<128x4xf32>
    %c0_i32_5 = arith.constant 0 : i32
    %11 = arith.addi %0, %c0_i32_5 : i32
    %c0_6 = arith.constant 0 : index
    %12 = arith.index_cast %11 : i32 to index
    %c2 = arith.constant 2 : index
    %c0_7 = arith.constant 0 : index
    %13 = vector.load %arg2[%c0_6, %12, %c2, %c0_7] : memref<1x20x20x4xf32, #tpu.memory_space<vmem>>, vector<1x8x16x4xf32>
    %14 = vector.shape_cast %13 : vector<1x8x16x4xf32> to vector<8x16x4xf32>
    %15 = vector.shape_cast %14 : vector<8x16x4xf32> to vector<128x4xf32>
    %c0_i32_8 = arith.constant 0 : i32
    %16 = arith.addi %0, %c0_i32_8 : i32
    %c0_9 = arith.constant 0 : index
    %17 = arith.index_cast %16 : i32 to index
    %c3 = arith.constant 3 : index
    %c0_10 = arith.constant 0 : index
    %18 = vector.load %arg2[%c0_9, %17, %c3, %c0_10] : memref<1x20x20x4xf32, #tpu.memory_space<vmem>>, vector<1x8x16x4xf32>
    %19 = vector.shape_cast %18 : vector<1x8x16x4xf32> to vector<8x16x4xf32>
    %20 = vector.shape_cast %19 : vector<8x16x4xf32> to vector<128x4xf32>
    %c0_i32_11 = arith.constant 0 : i32
    %21 = arith.addi %0, %c0_i32_11 : i32
    %c0_12 = arith.constant 0 : index
    %22 = arith.index_cast %21 : i32 to index
    %c4 = arith.constant 4 : index
    %c0_13 = arith.constant 0 : index
    %23 = vector.load %arg2[%c0_12, %22, %c4, %c0_13] : memref<1x20x20x4xf32, #tpu.memory_space<vmem>>, vector<1x8x16x4xf32>
    %24 = vector.shape_cast %23 : vector<1x8x16x4xf32> to vector<8x16x4xf32>
    %25 = vector.shape_cast %24 : vector<8x16x4xf32> to vector<128x4xf32>
    %c1_i32 = arith.constant 1 : i32
    %26 = arith.addi %0, %c1_i32 : i32
    %c0_14 = arith.constant 0 : index
    %27 = arith.index_cast %26 : i32 to index
    %c0_15 = arith.constant 0 : index
    %c0_16 = arith.constant 0 : index
    %28 = vector.load %arg2[%c0_14, %27, %c0_15, %c0_16] : memref<1x20x20x4xf32, #tpu.memory_space<vmem>>, vector<1x8x16x4xf32>
    %29 = vector.shape_cast %28 : vector<1x8x16x4xf32> to vector<8x16x4xf32>
    %30 = vector.shape_cast %29 : vector<8x16x4xf32> to vector<128x4xf32>
    %c1_i32_17 = arith.constant 1 : i32
    %31 = arith.addi %0, %c1_i32_17 : i32
    %c0_18 = arith.constant 0 : index
    %32 = arith.index_cast %31 : i32 to index
    %c1_19 = arith.constant 1 : index
    %c0_20 = arith.constant 0 : index
    %33 = vector.load %arg2[%c0_18, %32, %c1_19, %c0_20] : memref<1x20x20x4xf32, #tpu.memory_space<vmem>>, vector<1x8x16x4xf32>
    %34 = vector.shape_cast %33 : vector<1x8x16x4xf32> to vector<8x16x4xf32>
    %35 = vector.shape_cast %34 : vector<8x16x4xf32> to vector<128x4xf32>
    %c1_i32_21 = arith.constant 1 : i32
    %36 = arith.addi %0, %c1_i32_21 : i32
    %c0_22 = arith.constant 0 : index
    %37 = arith.index_cast %36 : i32 to index
    %c2_23 = arith.constant 2 : index
    %c0_24 = arith.constant 0 : index
    %38 = vector.load %arg2[%c0_22, %37, %c2_23, %c0_24] : memref<1x20x20x4xf32, #tpu.memory_space<vmem>>, vector<1x8x16x4xf32>
    %39 = vector.shape_cast %38 : vector<1x8x16x4xf32> to vector<8x16x4xf32>
    %40 = vector.shape_cast %39 : vector<8x16x4xf32> to vector<128x4xf32>
    %c1_i32_25 = arith.constant 1 : i32
    %41 = arith.addi %0, %c1_i32_25 : i32
    %c0_26 = arith.constant 0 : index
    %42 = arith.index_cast %41 : i32 to index
    %c3_27 = arith.constant 3 : index
    %c0_28 = arith.constant 0 : index
    %43 = vector.load %arg2[%c0_26, %42, %c3_27, %c0_28] : memref<1x20x20x4xf32, #tpu.memory_space<vmem>>, vector<1x8x16x4xf32>
    %44 = vector.shape_cast %43 : vector<1x8x16x4xf32> to vector<8x16x4xf32>
    %45 = vector.shape_cast %44 : vector<8x16x4xf32> to vector<128x4xf32>
    %c1_i32_29 = arith.constant 1 : i32
    %46 = arith.addi %0, %c1_i32_29 : i32
    %c0_30 = arith.constant 0 : index
    %47 = arith.index_cast %46 : i32 to index
    %c4_31 = arith.constant 4 : index
    %c0_32 = arith.constant 0 : index
    %48 = vector.load %arg2[%c0_30, %47, %c4_31, %c0_32] : memref<1x20x20x4xf32, #tpu.memory_space<vmem>>, vector<1x8x16x4xf32>
    %49 = vector.shape_cast %48 : vector<1x8x16x4xf32> to vector<8x16x4xf32>
    %50 = vector.shape_cast %49 : vector<8x16x4xf32> to vector<128x4xf32>
    %c2_i32 = arith.constant 2 : i32
    %51 = arith.addi %0, %c2_i32 : i32
    %c0_33 = arith.constant 0 : index
    %52 = arith.index_cast %51 : i32 to index
    %c0_34 = arith.constant 0 : index
    %c0_35 = arith.constant 0 : index
    %53 = vector.load %arg2[%c0_33, %52, %c0_34, %c0_35] : memref<1x20x20x4xf32, #tpu.memory_space<vmem>>, vector<1x8x16x4xf32>
    %54 = vector.shape_cast %53 : vector<1x8x16x4xf32> to vector<8x16x4xf32>
    %55 = vector.shape_cast %54 : vector<8x16x4xf32> to vector<128x4xf32>
    %c2_i32_36 = arith.constant 2 : i32
    %56 = arith.addi %0, %c2_i32_36 : i32
    %c0_37 = arith.constant 0 : index
    %57 = arith.index_cast %56 : i32 to index
    %c1_38 = arith.constant 1 : index
    %c0_39 = arith.constant 0 : index
    %58 = vector.load %arg2[%c0_37, %57, %c1_38, %c0_39] : memref<1x20x20x4xf32, #tpu.memory_space<vmem>>, vector<1x8x16x4xf32>
    %59 = vector.shape_cast %58 : vector<1x8x16x4xf32> to vector<8x16x4xf32>
    %60 = vector.shape_cast %59 : vector<8x16x4xf32> to vector<128x4xf32>
    %c2_i32_40 = arith.constant 2 : i32
    %61 = arith.addi %0, %c2_i32_40 : i32
    %c0_41 = arith.constant 0 : index
    %62 = arith.index_cast %61 : i32 to index
    %c2_42 = arith.constant 2 : index
    %c0_43 = arith.constant 0 : index
    %63 = vector.load %arg2[%c0_41, %62, %c2_42, %c0_43] : memref<1x20x20x4xf32, #tpu.memory_space<vmem>>, vector<1x8x16x4xf32>
    %64 = vector.shape_cast %63 : vector<1x8x16x4xf32> to vector<8x16x4xf32>
    %65 = vector.shape_cast %64 : vector<8x16x4xf32> to vector<128x4xf32>
    %c2_i32_44 = arith.constant 2 : i32
    %66 = arith.addi %0, %c2_i32_44 : i32
    %c0_45 = arith.constant 0 : index
    %67 = arith.index_cast %66 : i32 to index
    %c3_46 = arith.constant 3 : index
    %c0_47 = arith.constant 0 : index
    %68 = vector.load %arg2[%c0_45, %67, %c3_46, %c0_47] : memref<1x20x20x4xf32, #tpu.memory_space<vmem>>, vector<1x8x16x4xf32>
    %69 = vector.shape_cast %68 : vector<1x8x16x4xf32> to vector<8x16x4xf32>
    %70 = vector.shape_cast %69 : vector<8x16x4xf32> to vector<128x4xf32>
    %c2_i32_48 = arith.constant 2 : i32
    %71 = arith.addi %0, %c2_i32_48 : i32
    %c0_49 = arith.constant 0 : index
    %72 = arith.index_cast %71 : i32 to index
    %c4_50 = arith.constant 4 : index
    %c0_51 = arith.constant 0 : index
    %73 = vector.load %arg2[%c0_49, %72, %c4_50, %c0_51] : memref<1x20x20x4xf32, #tpu.memory_space<vmem>>, vector<1x8x16x4xf32>
    %74 = vector.shape_cast %73 : vector<1x8x16x4xf32> to vector<8x16x4xf32>
    %75 = vector.shape_cast %74 : vector<8x16x4xf32> to vector<128x4xf32>
    %c3_i32 = arith.constant 3 : i32
    %76 = arith.addi %0, %c3_i32 : i32
    %c0_52 = arith.constant 0 : index
    %77 = arith.index_cast %76 : i32 to index
    %c0_53 = arith.constant 0 : index
    %c0_54 = arith.constant 0 : index
    %78 = vector.load %arg2[%c0_52, %77, %c0_53, %c0_54] : memref<1x20x20x4xf32, #tpu.memory_space<vmem>>, vector<1x8x16x4xf32>
    %79 = vector.shape_cast %78 : vector<1x8x16x4xf32> to vector<8x16x4xf32>
    %80 = vector.shape_cast %79 : vector<8x16x4xf32> to vector<128x4xf32>
    %c3_i32_55 = arith.constant 3 : i32
    %81 = arith.addi %0, %c3_i32_55 : i32
    %c0_56 = arith.constant 0 : index
    %82 = arith.index_cast %81 : i32 to index
    %c1_57 = arith.constant 1 : index
    %c0_58 = arith.constant 0 : index
    %83 = vector.load %arg2[%c0_56, %82, %c1_57, %c0_58] : memref<1x20x20x4xf32, #tpu.memory_space<vmem>>, vector<1x8x16x4xf32>
    %84 = vector.shape_cast %83 : vector<1x8x16x4xf32> to vector<8x16x4xf32>
    %85 = vector.shape_cast %84 : vector<8x16x4xf32> to vector<128x4xf32>
    %c3_i32_59 = arith.constant 3 : i32
    %86 = arith.addi %0, %c3_i32_59 : i32
    %c0_60 = arith.constant 0 : index
    %87 = arith.index_cast %86 : i32 to index
    %c2_61 = arith.constant 2 : index
    %c0_62 = arith.constant 0 : index
    %88 = vector.load %arg2[%c0_60, %87, %c2_61, %c0_62] : memref<1x20x20x4xf32, #tpu.memory_space<vmem>>, vector<1x8x16x4xf32>
    %89 = vector.shape_cast %88 : vector<1x8x16x4xf32> to vector<8x16x4xf32>
    %90 = vector.shape_cast %89 : vector<8x16x4xf32> to vector<128x4xf32>
    %c3_i32_63 = arith.constant 3 : i32
    %91 = arith.addi %0, %c3_i32_63 : i32
    %c0_64 = arith.constant 0 : index
    %92 = arith.index_cast %91 : i32 to index
    %c3_65 = arith.constant 3 : index
    %c0_66 = arith.constant 0 : index
    %93 = vector.load %arg2[%c0_64, %92, %c3_65, %c0_66] : memref<1x20x20x4xf32, #tpu.memory_space<vmem>>, vector<1x8x16x4xf32>
    %94 = vector.shape_cast %93 : vector<1x8x16x4xf32> to vector<8x16x4xf32>
    %95 = vector.shape_cast %94 : vector<8x16x4xf32> to vector<128x4xf32>
    %c3_i32_67 = arith.constant 3 : i32
    %96 = arith.addi %0, %c3_i32_67 : i32
    %c0_68 = arith.constant 0 : index
    %97 = arith.index_cast %96 : i32 to index
    %c4_69 = arith.constant 4 : index
    %c0_70 = arith.constant 0 : index
    %98 = vector.load %arg2[%c0_68, %97, %c4_69, %c0_70] : memref<1x20x20x4xf32, #tpu.memory_space<vmem>>, vector<1x8x16x4xf32>
    %99 = vector.shape_cast %98 : vector<1x8x16x4xf32> to vector<8x16x4xf32>
    %100 = vector.shape_cast %99 : vector<8x16x4xf32> to vector<128x4xf32>
    %c4_i32 = arith.constant 4 : i32
    %101 = arith.addi %0, %c4_i32 : i32
    %c0_71 = arith.constant 0 : index
    %102 = arith.index_cast %101 : i32 to index
    %c0_72 = arith.constant 0 : index
    %c0_73 = arith.constant 0 : index
    %103 = vector.load %arg2[%c0_71, %102, %c0_72, %c0_73] : memref<1x20x20x4xf32, #tpu.memory_space<vmem>>, vector<1x8x16x4xf32>
    %104 = vector.shape_cast %103 : vector<1x8x16x4xf32> to vector<8x16x4xf32>
    %105 = vector.shape_cast %104 : vector<8x16x4xf32> to vector<128x4xf32>
    %c4_i32_74 = arith.constant 4 : i32
    %106 = arith.addi %0, %c4_i32_74 : i32
    %c0_75 = arith.constant 0 : index
    %107 = arith.index_cast %106 : i32 to index
    %c1_76 = arith.constant 1 : index
    %c0_77 = arith.constant 0 : index
    %108 = vector.load %arg2[%c0_75, %107, %c1_76, %c0_77] : memref<1x20x20x4xf32, #tpu.memory_space<vmem>>, vector<1x8x16x4xf32>
    %109 = vector.shape_cast %108 : vector<1x8x16x4xf32> to vector<8x16x4xf32>
    %110 = vector.shape_cast %109 : vector<8x16x4xf32> to vector<128x4xf32>
    %c4_i32_78 = arith.constant 4 : i32
    %111 = arith.addi %0, %c4_i32_78 : i32
    %c0_79 = arith.constant 0 : index
    %112 = arith.index_cast %111 : i32 to index
    %c2_80 = arith.constant 2 : index
    %c0_81 = arith.constant 0 : index
    %113 = vector.load %arg2[%c0_79, %112, %c2_80, %c0_81] : memref<1x20x20x4xf32, #tpu.memory_space<vmem>>, vector<1x8x16x4xf32>
    %114 = vector.shape_cast %113 : vector<1x8x16x4xf32> to vector<8x16x4xf32>
    %115 = vector.shape_cast %114 : vector<8x16x4xf32> to vector<128x4xf32>
    %c4_i32_82 = arith.constant 4 : i32
    %116 = arith.addi %0, %c4_i32_82 : i32
    %c0_83 = arith.constant 0 : index
    %117 = arith.index_cast %116 : i32 to index
    %c3_84 = arith.constant 3 : index
    %c0_85 = arith.constant 0 : index
    %118 = vector.load %arg2[%c0_83, %117, %c3_84, %c0_85] : memref<1x20x20x4xf32, #tpu.memory_space<vmem>>, vector<1x8x16x4xf32>
    %119 = vector.shape_cast %118 : vector<1x8x16x4xf32> to vector<8x16x4xf32>
    %120 = vector.shape_cast %119 : vector<8x16x4xf32> to vector<128x4xf32>
    %c4_i32_86 = arith.constant 4 : i32
    %121 = arith.addi %0, %c4_i32_86 : i32
    %c0_87 = arith.constant 0 : index
    %122 = arith.index_cast %121 : i32 to index
    %c4_88 = arith.constant 4 : index
    %c0_89 = arith.constant 0 : index
    %123 = vector.load %arg2[%c0_87, %122, %c4_88, %c0_89] : memref<1x20x20x4xf32, #tpu.memory_space<vmem>>, vector<1x8x16x4xf32>
    %124 = vector.shape_cast %123 : vector<1x8x16x4xf32> to vector<8x16x4xf32>
    %125 = vector.shape_cast %124 : vector<8x16x4xf32> to vector<128x4xf32>
    %126 = tpu.concatenate %5, %10, %15, %20, %25, %30, %35, %40, %45, %50, %55, %60, %65, %70, %75, %80 in 1 : vector<128x4xf32>, vector<128x4xf32>, vector<128x4xf32>, vector<128x4xf32>, vector<128x4xf32>, vector<128x4xf32>, vector<128x4xf32>, vector<128x4xf32>, vector<128x4xf32>, vector<128x4xf32>, vector<128x4xf32>, vector<128x4xf32>, vector<128x4xf32>, vector<128x4xf32>, vector<128x4xf32>, vector<128x4xf32> -> vector<128x64xf32>
    %127 = tpu.concatenate %85, %90, %95, %100, %105, %110, %115, %120, %125 in 1 : vector<128x4xf32>, vector<128x4xf32>, vector<128x4xf32>, vector<128x4xf32>, vector<128x4xf32>, vector<128x4xf32>, vector<128x4xf32>, vector<128x4xf32>, vector<128x4xf32> -> vector<128x36xf32>
    %128 = tpu.concatenate %126, %127 in 1 : vector<128x64xf32>, vector<128x36xf32> -> vector<128x100xf32>
    %c0_90 = arith.constant 0 : index
    %c0_91 = arith.constant 0 : index
    %129 = vector.load %arg3[%c0_90, %c0_91] : memref<100x128xf32, #tpu.memory_space<vmem>>, vector<100x128xf32>
    %cst = arith.constant dense<0.000000e+00> : vector<128x128xf32>
    %130 = tpu.matmul %128, %129, %cst {dimension_numbers = #tpu.dot_dimension_numbers<[1], [0], [0], [1], [0, 0, 1, 1], [], []>} : vector<128x100xf32>, vector<100x128xf32>, vector<128x128xf32> -> vector<128x128xf32>
    %cst_92 = arith.constant dense<0.000000e+00> : vector<128xf32>
    %131 = vector.multi_reduction <add>, %130, %cst_92 [0] : vector<128x128xf32> to vector<128xf32>
    %132 = vector.shape_cast %131 : vector<128xf32> to vector<1x128xf32>
    %133 = arith.mulf %130, %130 : vector<128x128xf32>
    %cst_93 = arith.constant dense<0.000000e+00> : vector<128xf32>
    %134 = vector.multi_reduction <add>, %133, %cst_93 [0] : vector<128x128xf32> to vector<128xf32>
    %135 = vector.shape_cast %134 : vector<128xf32> to vector<1x128xf32>
    %136 = vector.shape_cast %130 : vector<128x128xf32> to vector<1x8x16x128xf32>
    %c0_94 = arith.constant 0 : index
    %c0_95 = arith.constant 0 : index
    %c0_96 = arith.constant 0 : index
    %c0_97 = arith.constant 0 : index
    %137 = vector.load %arg4[%c0_94, %c0_95, %c0_96, %c0_97] : memref<1x8x16x128xf32, #tpu.memory_space<vmem>>, vector<1x8x16x128xf32>
    tpu.vector_store %arg4[%c0_94, %c0_95, %c0_96, %c0_97], %136 {strides = array<i32>} : memref<1x8x16x128xf32, #tpu.memory_space<vmem>>, vector<1x8x16x128xf32>,
    %138 = tpu.concatenate %132, %135 in 0 : vector<1x128xf32>, vector<1x128xf32> -> vector<2x128xf32>
    %139 = vector.shape_cast %138 : vector<2x128xf32> to vector<1x1x2x128xf32>
    %c0_98 = arith.constant 0 : index
    %c0_99 = arith.constant 0 : index
    %c0_100 = arith.constant 0 : index
    %c0_101 = arith.constant 0 : index
    %140 = vector.load %arg5[%c0_98, %c0_99, %c0_100, %c0_101] : memref<1x1x2x128xf32, #tpu.memory_space<vmem>>, vector<1x1x2x128xf32>
    tpu.vector_store %arg5[%c0_98, %c0_99, %c0_100, %c0_101], %139 {strides = array<i32>} : memref<1x1x2x128xf32, #tpu.memory_space<vmem>>, vector<1x1x2x128xf32>,
    return
  }
  func.func @transform_0(%arg0: i32, %arg1: i32) -> (i32, i32, i32, i32) {
    %c0_i32 = arith.constant 0 : i32
    %c0_i32_0 = arith.constant 0 : i32
    %c0_i32_1 = arith.constant 0 : i32
    %c0_i32_2 = arith.constant 0 : i32
    return %arg0, %c0_i32, %c0_i32_0, %c0_i32_1 : i32, i32, i32, i32
  }
  func.func @transform_1(%arg0: i32, %arg1: i32) -> (i32, i32) {
    %c0_i32 = arith.constant 0 : i32
    %c0_i32_0 = arith.constant 0 : i32
    %c0_i32_1 = arith.constant 0 : i32
    return %c0_i32, %c0_i32_0 : i32, i32
  }
  func.func @transform_2(%arg0: i32, %arg1: i32) -> (i32, i32, i32, i32) {
    %c0_i32 = arith.constant 0 : i32
    %c0_i32_0 = arith.constant 0 : i32
    %c0_i32_1 = arith.constant 0 : i32
    return %arg0, %arg1, %c0_i32, %c0_i32_0 : i32, i32, i32, i32
  }
  func.func @transform_3(%arg0: i32, %arg1: i32) -> (i32, i32, i32, i32) {
    %c0_i32 = arith.constant 0 : i32
    %c0_i32_0 = arith.constant 0 : i32
    %c0_i32_1 = arith.constant 0 : i32
    return %arg0, %arg1, %c0_i32, %c0_i32_0 : i32, i32, i32, i32
  }
}

module attributes {stable_mosaic.version = 11 : i64} {
  func.func @bn_relu_kernel(%arg0: i32, %arg1: memref<512x128xf32, #tpu.memory_space<vmem>>, %arg2: memref<1x128xf32, #tpu.memory_space<vmem>>, %arg3: memref<1x128xf32, #tpu.memory_space<vmem>>, %arg4: memref<512x128xf32, #tpu.memory_space<vmem>>) attributes {dimension_semantics = [#tpu.dimension_semantics<parallel>], iteration_bounds = array<i64: 1>, scalar_prefetch = 0 : i64, scratch_operands = 0 : i64, tpu.core_type = #tpu.core_type<tc>, window_params = [{transform_indices = @transform_0, window_bounds = array<i64: 512, 128>}, {pipeline_mode = #tpu.pipeline_mode<synchronous>, transform_indices = @transform_1, window_bounds = array<i64: 1, 128>}, {pipeline_mode = #tpu.pipeline_mode<synchronous>, transform_indices = @transform_2, window_bounds = array<i64: 1, 128>}, {transform_indices = @transform_3, window_bounds = array<i64: 512, 128>}]} {
    %c0 = arith.constant 0 : index
    %c0_0 = arith.constant 0 : index
    %0 = vector.load %arg1[%c0, %c0_0] : memref<512x128xf32, #tpu.memory_space<vmem>>, vector<512x128xf32>
    %c0_1 = arith.constant 0 : index
    %c0_2 = arith.constant 0 : index
    %1 = vector.load %arg2[%c0_1, %c0_2] : memref<1x128xf32, #tpu.memory_space<vmem>>, vector<1x128xf32>
    %2 = vector.broadcast %1 : vector<1x128xf32> to vector<512x128xf32>
    %3 = arith.mulf %0, %2 : vector<512x128xf32>
    %c0_3 = arith.constant 0 : index
    %c0_4 = arith.constant 0 : index
    %4 = vector.load %arg3[%c0_3, %c0_4] : memref<1x128xf32, #tpu.memory_space<vmem>>, vector<1x128xf32>
    %5 = vector.broadcast %4 : vector<1x128xf32> to vector<512x128xf32>
    %6 = arith.addf %3, %5 : vector<512x128xf32>
    %cst = arith.constant 0.000000e+00 : f32
    %7 = vector.broadcast %cst : f32 to vector<512x128xf32>
    %8 = arith.maximumf %6, %7 : vector<512x128xf32>
    %c0_5 = arith.constant 0 : index
    %c0_6 = arith.constant 0 : index
    %9 = vector.load %arg4[%c0_5, %c0_6] : memref<512x128xf32, #tpu.memory_space<vmem>>, vector<512x128xf32>
    tpu.vector_store %arg4[%c0_5, %c0_6], %8 {strides = array<i32>} : memref<512x128xf32, #tpu.memory_space<vmem>>, vector<512x128xf32>,
    return
  }
  func.func @transform_0(%arg0: i32) -> (i32, i32) {
    %c0_i32 = arith.constant 0 : i32
    %c0_i32_0 = arith.constant 0 : i32
    return %arg0, %c0_i32 : i32, i32
  }
  func.func @transform_1(%arg0: i32) -> (i32, i32) {
    %c0_i32 = arith.constant 0 : i32
    %c0_i32_0 = arith.constant 0 : i32
    %c0_i32_1 = arith.constant 0 : i32
    return %c0_i32, %c0_i32_0 : i32, i32
  }
  func.func @transform_2(%arg0: i32) -> (i32, i32) {
    %c0_i32 = arith.constant 0 : i32
    %c0_i32_0 = arith.constant 0 : i32
    %c0_i32_1 = arith.constant 0 : i32
    return %c0_i32, %c0_i32_0 : i32, i32
  }
  func.func @transform_3(%arg0: i32) -> (i32, i32) {
    %c0_i32 = arith.constant 0 : i32
    %c0_i32_0 = arith.constant 0 : i32
    return %arg0, %c0_i32 : i32, i32
  }
}

</mosaic_0001>

<llo_original>
// kernel: conv2d_block_forward.3
$region0: #{conv2d_block_forward.3}
  #allocation0 [shape = 'u32[]', space=smem, size = 0x4, offset = 0x4, fixed_abs, tag = 'smem constant byte address 0x4 - core index']
  #allocation1 [shape = 'u32[144,128]{1,0:T(1,128)}', space=vmem, size = 0x12000, scoped, tag = 'internal scratch']
  %s0 = inlined_call_operand.vmem [shape: f32[512,128], index: 0, kind: input, shape index: {}]
  %s1 = inlined_call_operand.vmem [shape: f32[1,128], index: 1, kind: input, shape index: {}]
  %s2 = inlined_call_operand.vmem [shape: f32[1,128], index: 2, kind: input, shape index: {}]
  %s3 = inlined_call_operand.vmem [shape: f32[512,128], index: 3, kind: output, shape index: {}]
  %s4 = sld [smem:[#allocation0]]
  $region22: #{conv2d_block_forward.3} parent=0
    _
  %s6 = ssub.s32 1, %s4
  %s7 = scalar_select 0, %s6, %s4
  // Predicated region
  $region2: #{conv2d_block_forward.3} parent=0 // pred_check
    _
  $region3: #{conv2d_block_forward.3} parent=0 // pred_check_branch
    %9 = sbr.rel (0) target = $region5
  $region4: #{conv2d_block_forward.3} parent=0 // pred_region
    _
  $region5: #{conv2d_block_forward.3} parent=0 // pred_fallthru
    _
  // Predicated region
  $region6: #{conv2d_block_forward.3} parent=0 // pred_check
    _
  $region7: #{conv2d_block_forward.3} parent=0 // pred_check_branch
    %11 = sbr.rel (0) target = $region9
  $region8: #{conv2d_block_forward.3} parent=0 // pred_region
    _
  $region9: #{conv2d_block_forward.3} parent=0 // pred_fallthru
    _
  // Predicated region
  $region10: #{conv2d_block_forward.3} parent=0 // pred_check
    _
  $region11: #{conv2d_block_forward.3} parent=0 // pred_check_branch
    %13 = sbr.rel (0) target = $region13
  $region12: #{conv2d_block_forward.3} parent=0 // pred_region
    _
  $region13: #{conv2d_block_forward.3} parent=0 // pred_fallthru
    _
  %v14 = vld [vmem:[%s0] sm:$0xff]
  %v15 = vld [vmem:[%s0 + $0x8] sm:$0xff]
  %v16 = vld [vmem:[%s0 + $0x10] sm:$0xff]
  %v17 = vld [vmem:[%s0 + $0x18] sm:$0xff]
  %v18 = vld [vmem:[%s0 + $0x20] sm:$0xff]
  %v19 = vld [vmem:[%s0 + $0x28] sm:$0xff]
  %v20 = vld [vmem:[%s0 + $0x30] sm:$0xff]
  %v21 = vld [vmem:[%s0 + $0x38] sm:$0xff]
  %v22 = vld [vmem:[%s0 + $0x40] sm:$0xff]
  %v23 = vld [vmem:[%s0 + $0x48] sm:$0xff]
  %v24 = vld [vmem:[%s0 + $0x50] sm:$0xff]
  %v25 = vld [vmem:[%s0 + $0x58] sm:$0xff]
  %v26 = vld [vmem:[%s0 + $0x60] sm:$0xff]
  %v27 = vld [vmem:[%s0 + $0x68] sm:$0xff]
  %v28 = vld [vmem:[%s0 + $0x70] sm:$0xff]
  %v29 = vld [vmem:[%s0 + $0x78] sm:$0xff]
  %v30 = vld [vmem:[%s0 + $0x80] sm:$0xff]
  %v31 = vld [vmem:[%s0 + $0x88] sm:$0xff]
  %v32 = vld [vmem:[%s0 + $0x90] sm:$0xff]
  %v33 = vld [vmem:[%s0 + $0x98] sm:$0xff]
  %v34 = vld [vmem:[%s0 + $0xa0] sm:$0xff]
  %v35 = vld [vmem:[%s0 + $0xa8] sm:$0xff]
  %v36 = vld [vmem:[%s0 + $0xb0] sm:$0xff]
  %v37 = vld [vmem:[%s0 + $0xb8] sm:$0xff]
  %v38 = vld [vmem:[%s0 + $0xc0] sm:$0xff]
  %v39 = vld [vmem:[%s0 + $0xc8] sm:$0xff]
  %v40 = vld [vmem:[%s0 + $0xd0] sm:$0xff]
  %v41 = vld [vmem:[%s0 + $0xd8] sm:$0xff]
  %v42 = vld [vmem:[%s0 + $0xe0] sm:$0xff]
  %v43 = vld [vmem:[%s0 + $0xe8] sm:$0xff]
  %v44 = vld [vmem:[%s0 + $0xf0] sm:$0xff]
  %v45 = vld [vmem:[%s0 + $0xf8] sm:$0xff]
  %v46 = vld [vmem:[%s0 + $0x100] sm:$0xff]
  %v47 = vld [vmem:[%s0 + $0x108] sm:$0xff]
  %v48 = vld [vmem:[%s0 + $0x110] sm:$0xff]
  %v49 = vld [vmem:[%s0 + $0x118] sm:$0xff]
  %v50 = vld [vmem:[%s0 + $0x120] sm:$0xff]
  %v51 = vld [vmem:[%s0 + $0x128] sm:$0xff]
  %v52 = vld [vmem:[%s0 + $0x130] sm:$0xff]
  %v53 = vld [vmem:[%s0 + $0x138] sm:$0xff]
  %v54 = vld [vmem:[%s0 + $0x140] sm:$0xff]
  %v55 = vld [vmem:[%s0 + $0x148] sm:$0xff]
  %v56 = vld [vmem:[%s0 + $0x150] sm:$0xff]
  %v57 = vld [vmem:[%s0 + $0x158] sm:$0xff]
  %v58 = vld [vmem:[%s0 + $0x160] sm:$0xff]
  %v59 = vld [vmem:[%s0 + $0x168] sm:$0xff]
  %v60 = vld [vmem:[%s0 + $0x170] sm:$0xff]
  %v61 = vld [vmem:[%s0 + $0x178] sm:$0xff]
  %v62 = vld [vmem:[%s0 + $0x180] sm:$0xff]
  %v63 = vld [vmem:[%s0 + $0x188] sm:$0xff]
  %v64 = vld [vmem:[%s0 + $0x190] sm:$0xff]
  %v65 = vld [vmem:[%s0 + $0x198] sm:$0xff]
  %v66 = vld [vmem:[%s0 + $0x1a0] sm:$0xff]
  %v67 = vld [vmem:[%s0 + $0x1a8] sm:$0xff]
  %v68 = vld [vmem:[%s0 + $0x1b0] sm:$0xff]
  %v69 = vld [vmem:[%s0 + $0x1b8] sm:$0xff]
  %v70 = vld [vmem:[%s0 + $0x1c0] sm:$0xff]
  %v71 = vld [vmem:[%s0 + $0x1c8] sm:$0xff]
  %v72 = vld [vmem:[%s0 + $0x1d0] sm:$0xff]
  %v73 = vld [vmem:[%s0 + $0x1d8] sm:$0xff]
  %v74 = vld [vmem:[%s0 + $0x1e0] sm:$0xff]
  %v75 = vld [vmem:[%s0 + $0x1e8] sm:$0xff]
  %v76 = vld [vmem:[%s0 + $0x1f0] sm:$0xff]
  %v77 = vld [vmem:[%s0 + $0x1f8] sm:$0xff]
  %v78 = vld [vmem:[%s1] sm:$0x1]
  %v80 = vlaneseq
  %v81 = vshrl.u32 %v80, 7
  %v82 = vsub.s32 0, %v81
  %v83 = vrot.slane %v78, %v82
  %v85 = vmul.f32 %v14, %v83
  %v86 = vmul.f32 %v15, %v83
  %v87 = vmul.f32 %v16, %v83
  %v88 = vmul.f32 %v17, %v83
  %v89 = vmul.f32 %v18, %v83
  %v90 = vmul.f32 %v19, %v83
  %v91 = vmul.f32 %v20, %v83
  %v92 = vmul.f32 %v21, %v83
  %v93 = vmul.f32 %v22, %v83
  %v94 = vmul.f32 %v23, %v83
  %v95 = vmul.f32 %v24, %v83
  %v96 = vmul.f32 %v25, %v83
  %v97 = vmul.f32 %v26, %v83
  %v98 = vmul.f32 %v27, %v83
  %v99 = vmul.f32 %v28, %v83
  %v100 = vmul.f32 %v29, %v83
  %v101 = vmul.f32 %v30, %v83
  %v102 = vmul.f32 %v31, %v83
  %v103 = vmul.f32 %v32, %v83
  %v104 = vmul.f32 %v33, %v83
  %v105 = vmul.f32 %v34, %v83
  %v106 = vmul.f32 %v35, %v83
  %v107 = vmul.f32 %v36, %v83
  %v108 = vmul.f32 %v37, %v83
  %v109 = vmul.f32 %v38, %v83
  %v110 = vmul.f32 %v39, %v83
  %v111 = vmul.f32 %v40, %v83
  %v112 = vmul.f32 %v41, %v83
  %v113 = vmul.f32 %v42, %v83
  %v114 = vmul.f32 %v43, %v83
  %v115 = vmul.f32 %v44, %v83
  %v116 = vmul.f32 %v45, %v83
  %v117 = vmul.f32 %v46, %v83
  %v118 = vmul.f32 %v47, %v83
  %v119 = vmul.f32 %v48, %v83
  %v120 = vmul.f32 %v49, %v83
  %v121 = vmul.f32 %v50, %v83
  %v122 = vmul.f32 %v51, %v83
  %v123 = vmul.f32 %v52, %v83
  %v124 = vmul.f32 %v53, %v83
  %v125 = vmul.f32 %v54, %v83
  %v126 = vmul.f32 %v55, %v83
  %v127 = vmul.f32 %v56, %v83
  %v128 = vmul.f32 %v57, %v83
  %v129 = vmul.f32 %v58, %v83
  %v130 = vmul.f32 %v59, %v83
  %v131 = vmul.f32 %v60, %v83
  %v132 = vmul.f32 %v61, %v83
  %v133 = vmul.f32 %v62, %v83
  %v134 = vmul.f32 %v63, %v83
  %v135 = vmul.f32 %v64, %v83
  %v136 = vmul.f32 %v65, %v83
  %v137 = vmul.f32 %v66, %v83
  %v138 = vmul.f32 %v67, %v83
  %v139 = vmul.f32 %v68, %v83
  %v140 = vmul.f32 %v69, %v83
  %v141 = vmul.f32 %v70, %v83
  %v142 = vmul.f32 %v71, %v83
  %v143 = vmul.f32 %v72, %v83
  %v144 = vmul.f32 %v73, %v83
  %v145 = vmul.f32 %v74, %v83
  %v146 = vmul.f32 %v75, %v83
  %v147 = vmul.f32 %v76, %v83
  %v148 = vmul.f32 %v77, %v83
  %v149 = vld [vmem:[%s2] sm:$0x1]
  %v151 = vlaneseq
  %v152 = vshrl.u32 %v151, 7
  %v153 = vsub.s32 0, %v152
  %v154 = vrot.slane %v149, %v153
  %v156 = vadd.f32 %v85, %v154
  %v157 = vadd.f32 %v86, %v154
  %v158 = vadd.f32 %v87, %v154
  %v159 = vadd.f32 %v88, %v154
  %v160 = vadd.f32 %v89, %v154
  %v161 = vadd.f32 %v90, %v154
  %v162 = vadd.f32 %v91, %v154
  %v163 = vadd.f32 %v92, %v154
  %v164 = vadd.f32 %v93, %v154
  %v165 = vadd.f32 %v94, %v154
  %v166 = vadd.f32 %v95, %v154
  %v167 = vadd.f32 %v96, %v154
  %v168 = vadd.f32 %v97, %v154
  %v169 = vadd.f32 %v98, %v154
  %v170 = vadd.f32 %v99, %v154
  %v171 = vadd.f32 %v100, %v154
  %v172 = vadd.f32 %v101, %v154
  %v173 = vadd.f32 %v102, %v154
  %v174 = vadd.f32 %v103, %v154
  %v175 = vadd.f32 %v104, %v154
  %v176 = vadd.f32 %v105, %v154
  %v177 = vadd.f32 %v106, %v154
  %v178 = vadd.f32 %v107, %v154
  %v179 = vadd.f32 %v108, %v154
  %v180 = vadd.f32 %v109, %v154
  %v181 = vadd.f32 %v110, %v154
  %v182 = vadd.f32 %v111, %v154
  %v183 = vadd.f32 %v112, %v154
  %v184 = vadd.f32 %v113, %v154
  %v185 = vadd.f32 %v114, %v154
  %v186 = vadd.f32 %v115, %v154
  %v187 = vadd.f32 %v116, %v154
  %v188 = vadd.f32 %v117, %v154
  %v189 = vadd.f32 %v118, %v154
  %v190 = vadd.f32 %v119, %v154
  %v191 = vadd.f32 %v120, %v154
  %v192 = vadd.f32 %v121, %v154
  %v193 = vadd.f32 %v122, %v154
  %v194 = vadd.f32 %v123, %v154
  %v195 = vadd.f32 %v124, %v154
  %v196 = vadd.f32 %v125, %v154
  %v197 = vadd.f32 %v126, %v154
  %v198 = vadd.f32 %v127, %v154
  %v199 = vadd.f32 %v128, %v154
  %v200 = vadd.f32 %v129, %v154
  %v201 = vadd.f32 %v130, %v154
  %v202 = vadd.f32 %v131, %v154
  %v203 = vadd.f32 %v132, %v154
  %v204 = vadd.f32 %v133, %v154
  %v205 = vadd.f32 %v134, %v154
  %v206 = vadd.f32 %v135, %v154
  %v207 = vadd.f32 %v136, %v154
  %v208 = vadd.f32 %v137, %v154
  %v209 = vadd.f32 %v138, %v154
  %v210 = vadd.f32 %v139, %v154
  %v211 = vadd.f32 %v140, %v154
  %v212 = vadd.f32 %v141, %v154
  %v213 = vadd.f32 %v142, %v154
  %v214 = vadd.f32 %v143, %v154
  %v215 = vadd.f32 %v144, %v154
  %v216 = vadd.f32 %v145, %v154
  %v217 = vadd.f32 %v146, %v154
  %v218 = vadd.f32 %v147, %v154
  %v219 = vadd.f32 %v148, %v154
  %v220 = vmax.f32 %v156, 0.0
  %v221 = vmax.f32 %v157, 0.0
  %v222 = vmax.f32 %v158, 0.0
  %v223 = vmax.f32 %v159, 0.0
  %v224 = vmax.f32 %v160, 0.0
  %v225 = vmax.f32 %v161, 0.0
  %v226 = vmax.f32 %v162, 0.0
  %v227 = vmax.f32 %v163, 0.0
  %v228 = vmax.f32 %v164, 0.0
  %v229 = vmax.f32 %v165, 0.0
  %v230 = vmax.f32 %v166, 0.0
  %v231 = vmax.f32 %v167, 0.0
  %v232 = vmax.f32 %v168, 0.0
  %v233 = vmax.f32 %v169, 0.0
  %v234 = vmax.f32 %v170, 0.0
  %v235 = vmax.f32 %v171, 0.0
  %v236 = vmax.f32 %v172, 0.0
  %v237 = vmax.f32 %v173, 0.0
  %v238 = vmax.f32 %v174, 0.0
  %v239 = vmax.f32 %v175, 0.0
  %v240 = vmax.f32 %v176, 0.0
  %v241 = vmax.f32 %v177, 0.0
  %v242 = vmax.f32 %v178, 0.0
  %v243 = vmax.f32 %v179, 0.0
  %v244 = vmax.f32 %v180, 0.0
  %v245 = vmax.f32 %v181, 0.0
  %v246 = vmax.f32 %v182, 0.0
  %v247 = vmax.f32 %v183, 0.0
  %v248 = vmax.f32 %v184, 0.0
  %v249 = vmax.f32 %v185, 0.0
  %v250 = vmax.f32 %v186, 0.0
  %v251 = vmax.f32 %v187, 0.0
  %v252 = vmax.f32 %v188, 0.0
  %v253 = vmax.f32 %v189, 0.0
  %v254 = vmax.f32 %v190, 0.0
  %v255 = vmax.f32 %v191, 0.0
  %v256 = vmax.f32 %v192, 0.0
  %v257 = vmax.f32 %v193, 0.0
  %v258 = vmax.f32 %v194, 0.0
  %v259 = vmax.f32 %v195, 0.0
  %v260 = vmax.f32 %v196, 0.0
  %v261 = vmax.f32 %v197, 0.0
  %v262 = vmax.f32 %v198, 0.0
  %v263 = vmax.f32 %v199, 0.0
  %v264 = vmax.f32 %v200, 0.0
  %v265 = vmax.f32 %v201, 0.0
  %v266 = vmax.f32 %v202, 0.0
  %v267 = vmax.f32 %v203, 0.0
  %v268 = vmax.f32 %v204, 0.0
  %v269 = vmax.f32 %v205, 0.0
  %v270 = vmax.f32 %v206, 0.0
  %v271 = vmax.f32 %v207, 0.0
  %v272 = vmax.f32 %v208, 0.0
  %v273 = vmax.f32 %v209, 0.0
  %v274 = vmax.f32 %v210, 0.0
  %v275 = vmax.f32 %v211, 0.0
  %v276 = vmax.f32 %v212, 0.0
  %v277 = vmax.f32 %v213, 0.0
  %v278 = vmax.f32 %v214, 0.0
  %v279 = vmax.f32 %v215, 0.0
  %v280 = vmax.f32 %v216, 0.0
  %v281 = vmax.f32 %v217, 0.0
  %v282 = vmax.f32 %v218, 0.0
  %v283 = vmax.f32 %v219, 0.0
  %284 = vst [vmem:[%s3] sm:$0xff] %v220
  %285 = vst [vmem:[%s3 + $0x8] sm:$0xff] %v221
  %286 = vst [vmem:[%s3 + $0x10] sm:$0xff] %v222
  %287 = vst [vmem:[%s3 + $0x18] sm:$0xff] %v223
  %288 = vst [vmem:[%s3 + $0x20] sm:$0xff] %v224
  %289 = vst [vmem:[%s3 + $0x28] sm:$0xff] %v225
  %290 = vst [vmem:[%s3 + $0x30] sm:$0xff] %v226
  %291 = vst [vmem:[%s3 + $0x38] sm:$0xff] %v227
  %292 = vst [vmem:[%s3 + $0x40] sm:$0xff] %v228
  %293 = vst [vmem:[%s3 + $0x48] sm:$0xff] %v229
  %294 = vst [vmem:[%s3 + $0x50] sm:$0xff] %v230
  %295 = vst [vmem:[%s3 + $0x58] sm:$0xff] %v231
  %296 = vst [vmem:[%s3 + $0x60] sm:$0xff] %v232
  %297 = vst [vmem:[%s3 + $0x68] sm:$0xff] %v233
  %298 = vst [vmem:[%s3 + $0x70] sm:$0xff] %v234
  %299 = vst [vmem:[%s3 + $0x78] sm:$0xff] %v235
  %300 = vst [vmem:[%s3 + $0x80] sm:$0xff] %v236
  %301 = vst [vmem:[%s3 + $0x88] sm:$0xff] %v237
  %302 = vst [vmem:[%s3 + $0x90] sm:$0xff] %v238
  %303 = vst [vmem:[%s3 + $0x98] sm:$0xff] %v239
  %304 = vst [vmem:[%s3 + $0xa0] sm:$0xff] %v240
  %305 = vst [vmem:[%s3 + $0xa8] sm:$0xff] %v241
  %306 = vst [vmem:[%s3 + $0xb0] sm:$0xff] %v242
  %307 = vst [vmem:[%s3 + $0xb8] sm:$0xff] %v243
  %308 = vst [vmem:[%s3 + $0xc0] sm:$0xff] %v244
  %309 = vst [vmem:[%s3 + $0xc8] sm:$0xff] %v245
  %310 = vst [vmem:[%s3 + $0xd0] sm:$0xff] %v246
  %311 = vst [vmem:[%s3 + $0xd8] sm:$0xff] %v247
  %312 = vst [vmem:[%s3 + $0xe0] sm:$0xff] %v248
  %313 = vst [vmem:[%s3 + $0xe8] sm:$0xff] %v249
  %314 = vst [vmem:[%s3 + $0xf0] sm:$0xff] %v250
  %315 = vst [vmem:[%s3 + $0xf8] sm:$0xff] %v251
  %316 = vst [vmem:[%s3 + $0x100] sm:$0xff] %v252
  %317 = vst [vmem:[%s3 + $0x108] sm:$0xff] %v253
  %318 = vst [vmem:[%s3 + $0x110] sm:$0xff] %v254
  %319 = vst [vmem:[%s3 + $0x118] sm:$0xff] %v255
  %320 = vst [vmem:[%s3 + $0x120] sm:$0xff] %v256
  %321 = vst [vmem:[%s3 + $0x128] sm:$0xff] %v257
  %322 = vst [vmem:[%s3 + $0x130] sm:$0xff] %v258
  %323 = vst [vmem:[%s3 + $0x138] sm:$0xff] %v259
  %324 = vst [vmem:[%s3 + $0x140] sm:$0xff] %v260
  %325 = vst [vmem:[%s3 + $0x148] sm:$0xff] %v261
  %326 = vst [vmem:[%s3 + $0x150] sm:$0xff] %v262
  %327 = vst [vmem:[%s3 + $0x158] sm:$0xff] %v263
  %328 = vst [vmem:[%s3 + $0x160] sm:$0xff] %v264
  %329 = vst [vmem:[%s3 + $0x168] sm:$0xff] %v265
  %330 = vst [vmem:[%s3 + $0x170] sm:$0xff] %v266
  %331 = vst [vmem:[%s3 + $0x178] sm:$0xff] %v267
  %332 = vst [vmem:[%s3 + $0x180] sm:$0xff] %v268
  %333 = vst [vmem:[%s3 + $0x188] sm:$0xff] %v269
  %334 = vst [vmem:[%s3 + $0x190] sm:$0xff] %v270
  %335 = vst [vmem:[%s3 + $0x198] sm:$0xff] %v271
  %336 = vst [vmem:[%s3 + $0x1a0] sm:$0xff] %v272
  %337 = vst [vmem:[%s3 + $0x1a8] sm:$0xff] %v273
  %338 = vst [vmem:[%s3 + $0x1b0] sm:$0xff] %v274
  %339 = vst [vmem:[%s3 + $0x1b8] sm:$0xff] %v275
  %340 = vst [vmem:[%s3 + $0x1c0] sm:$0xff] %v276
  %341 = vst [vmem:[%s3 + $0x1c8] sm:$0xff] %v277
  %342 = vst [vmem:[%s3 + $0x1d0] sm:$0xff] %v278
  %343 = vst [vmem:[%s3 + $0x1d8] sm:$0xff] %v279
  %344 = vst [vmem:[%s3 + $0x1e0] sm:$0xff] %v280
  %345 = vst [vmem:[%s3 + $0x1e8] sm:$0xff] %v281
  %346 = vst [vmem:[%s3 + $0x1f0] sm:$0xff] %v282
  %347 = vst [vmem:[%s3 + $0x1f8] sm:$0xff] %v283
  // Predicated region
  $region14: #{conv2d_block_forward.3} parent=0 // pred_check
    _
  $region15: #{conv2d_block_forward.3} parent=0 // pred_check_branch
    %349 = sbr.rel (0) target = $region17
  $region16: #{conv2d_block_forward.3} parent=0 // pred_region
    _
  $region17: #{conv2d_block_forward.3} parent=0 // pred_fallthru
    _
  // Predicated region
  $region18: #{conv2d_block_forward.3} parent=0 // pred_check
    _
  $region19: #{conv2d_block_forward.3} parent=0 // pred_check_branch
    %351 = sbr.rel (0) target = $region21
  $region20: #{conv2d_block_forward.3} parent=0 // pred_region
    _
  $region21: #{conv2d_block_forward.3} parent=0 // pred_fallthru
    _

// kernel: conv2d_block_forward.2
$region0: #{conv2d_block_forward.2}
  #allocation0 [shape = 'u32[]', space=smem, size = 0x4, offset = 0x4, fixed_abs, tag = 'smem constant byte address 0x4 - core index']
  #allocation1 [shape = 'u32[144,128]{1,0:T(1,128)}', space=vmem, size = 0x12000, scoped, tag = 'internal scratch']
  %s0 = inlined_call_operand.vmem [shape: f32[2,20,20,4], index: 0, kind: input, shape index: {}]
  %s1 = inlined_call_operand.vmem [shape: f32[100,128], index: 1, kind: input, shape index: {}]
  %s2 = inlined_call_operand.vmem [shape: f32[2,16,16,128], index: 2, kind: output, shape index: {0}]
  %s3 = inlined_call_operand.vmem [shape: f32[2,2,2,128], index: 3, kind: output, shape index: {1}]
  %4 = xla_tuple %s2, %s3
  %s5 = sld [smem:[#allocation0]]
  $region49: #{conv2d_block_forward.2} parent=0
    _
  %s7 = ssub.s32 1, %s5
  %s8 = scalar_select 0, %s7, %s5
  loop: start=0, step=1, limit=6
  $region2: #{conv2d_block_forward.2} parent=0 // loop_pre_header
    _
  $region3: #{conv2d_block_forward.2} parent=0 // loop_header
    %s10 = sphi 0, %s14
    %p11 = scmp.ge.s32.totalorder %s10, 6
    %s17 = sphi 0, %s29
    %s18 = sphi 0, %s25
    %s19 = sphi 0, %s17
    %s20 = sphi 0, %s18
    %s21 = sphi 0, %s19
    %s22 = sphi 0, %s20
    %s32 = sphi 0, %s34
    %s35 = sphi 0, %s32
    %s36 = sphi 0, %s35
    %s52 = sphi 0, %s36
    %s56 = sphi 0, %s56
    %s58 = sphi 0, %s56
    %s59 = sphi 0, %s58
    %s73 = sphi 0, %s59
    %s81 = sphi 0, %s83
    %s84 = sphi 0, %s81
    %s85 = sphi 0, %s84
    %s101 = sphi 0, %s85
    %s109 = sphi 0, %s111
    %s112 = sphi 0, %s109
    %s113 = sphi 0, %s112
    %s129 = sphi 0, %s113
  $region4: #{conv2d_block_forward.2} parent=0 // loop_header_branch
    %13 = sbr.rel (%p11) target = $region8
  $region5: #{conv2d_block_forward.2} parent=0 // loop_body
    %s15 = ssub.s32 %s10, 1
    %s16 = ssub.s32 %s10, 2
    %s23 = sadd.s32 1, %s18
    %p24 = scmp.ge.s32.totalorder %s23, 2
    %s25 = scalar_select %p24, 0, %s23
    %s26 = sadd.s32 1, %s17
    %s27 = scalar_select %p24, %s26, %s17
    %p28 = scmp.ge.s32.totalorder %s27, 2
    %s29 = scalar_select %p28, 0, %s27
    %s30 = ssub.s32 %s17, %s29
    %p31 = scmp.eq.s32.totalorder %s30, 0
    %s33 = sadd.s32 %s32, 1
    %s34 = scalar_select %p31, %s32, %s33
    %p37 = pneg %p31
    %p38 = scmp.eq.s32.totalorder %s10, 3
    %p39 = por %p37, %p38
    %p40 = scmp.ne.s32.totalorder %s32, %s35
    %p41 = scmp.eq.s32.totalorder %s10, 0
    %p42 = por %p40, %p41
    %p43 = scmp.ne.s32.totalorder %s32, %s35
    %p44 = scmp.eq.s32.totalorder %s15, 3
    %p45 = por %p43, %p44
    %p46 = scmp.ne.s32.totalorder %s35, %s36
    %p47 = scmp.eq.s32.totalorder %s15, 0
    %p48 = por %p46, %p47
    %p49 = scmp.ne.s32.totalorder %s35, %s36
    %p50 = scmp.eq.s32.totalorder %s16, 3
    %p51 = por %p49, %p50
    %p53 = scmp.ne.s32.totalorder %s36, %s52
    %p54 = scmp.eq.s32.totalorder %s16, 0
    %p55 = por %p53, %p54
    %s57 = sadd.s32 %s56, 1
    %p60 = scmp.eq.s32.totalorder %s10, 3
    %p61 = scmp.ne.s32.totalorder %s56, %s58
    %p62 = scmp.eq.s32.totalorder %s10, 0
    %p63 = por %p61, %p62
    %p64 = scmp.ne.s32.totalorder %s56, %s58
    %p65 = scmp.eq.s32.totalorder %s15, 3
    %p66 = por %p64, %p65
    %p67 = scmp.ne.s32.totalorder %s58, %s59
    %p68 = scmp.eq.s32.totalorder %s15, 0
    %p69 = por %p67, %p68
    %p70 = scmp.ne.s32.totalorder %s58, %s59
    %p71 = scmp.eq.s32.totalorder %s16, 3
    %p72 = por %p70, %p71
    %p74 = scmp.ne.s32.totalorder %s59, %s73
    %p75 = scmp.eq.s32.totalorder %s16, 0
    %p76 = por %p74, %p75
    %s77 = ssub.s32 %s17, %s29
    %s78 = ssub.s32 %s18, %s25
    %s79 = sor.u32 %s77, %s78
    %p80 = scmp.eq.s32.totalorder %s79, 0
    %s82 = sadd.s32 %s81, 1
    %s83 = scalar_select %p80, %s81, %s82
    %p86 = pneg %p80
    %p87 = scmp.eq.s32.totalorder %s10, 3
    %p88 = por %p86, %p87
    %p89 = scmp.ne.s32.totalorder %s81, %s84
    %p90 = scmp.eq.s32.totalorder %s10, 0
    %p91 = por %p89, %p90
    %p92 = scmp.ne.s32.totalorder %s81, %s84
    %p93 = scmp.eq.s32.totalorder %s15, 3
    %p94 = por %p92, %p93
    %p95 = scmp.ne.s32.totalorder %s84, %s85
    %p96 = scmp.eq.s32.totalorder %s15, 0
    %p97 = por %p95, %p96
    %p98 = scmp.ne.s32.totalorder %s84, %s85
    %p99 = scmp.eq.s32.totalorder %s16, 3
    %p100 = por %p98, %p99
    %p102 = scmp.ne.s32.totalorder %s85, %s101
    %p103 = scmp.eq.s32.totalorder %s16, 0
    %p104 = por %p102, %p103
    %s105 = ssub.s32 %s17, %s29
    %s106 = ssub.s32 %s18, %s25
    %s107 = sor.u32 %s105, %s106
    %p108 = scmp.eq.s32.totalorder %s107, 0
    %s110 = sadd.s32 %s109, 1
    %s111 = scalar_select %p108, %s109, %s110
    %p114 = pneg %p108
    %p115 = scmp.eq.s32.totalorder %s10, 3
    %p116 = por %p114, %p115
    %p117 = scmp.ne.s32.totalorder %s109, %s112
    %p118 = scmp.eq.s32.totalorder %s10, 0
    %p119 = por %p117, %p118
    %p120 = scmp.ne.s32.totalorder %s109, %s112
    %p121 = scmp.eq.s32.totalorder %s15, 3
    %p122 = por %p120, %p121
    %p123 = scmp.ne.s32.totalorder %s112, %s113
    %p124 = scmp.eq.s32.totalorder %s15, 0
    %p125 = por %p123, %p124
    %p126 = scmp.ne.s32.totalorder %s112, %s113
    %p127 = scmp.eq.s32.totalorder %s16, 3
    %p128 = por %p126, %p127
    %p130 = scmp.ne.s32.totalorder %s113, %s129
    %p131 = scmp.eq.s32.totalorder %s16, 0
    %p132 = por %p130, %p131
    %p133 = scmp.le.s32.totalorder 1, %s10
    %p134 = scmp.lt.s32.totalorder %s10, 5
    %p135 = pnand %p133, %p134
    %p136 = pneg %p135
    // Predicated region
    $region9: #{conv2d_block_forward.2} parent=5 // pred_check
      _
    $region10: #{conv2d_block_forward.2} parent=5 // pred_check_branch
      %138 = sbr.rel (%p135) target = $region12
    $region11: #{conv2d_block_forward.2} parent=5 // pred_region
      %s139 = ssub.s32 %s10, 1
      // Predicated region
      $region13: #{conv2d_block_forward.2} parent=11 // pred_check
        %p140 = pneg %p69
      $region14: #{conv2d_block_forward.2} parent=11 // pred_check_branch
        %142 = sbr.rel (%p140) target = $region16
      $region15: #{conv2d_block_forward.2} parent=11 // pred_region
        _
      $region16: #{conv2d_block_forward.2} parent=11 // pred_fallthru
        _
    $region12: #{conv2d_block_forward.2} parent=5 // pred_fallthru
      _
    %p143 = scmp.lt.s32.totalorder %s10, 4
    // Predicated region
    $region17: #{conv2d_block_forward.2} parent=5 // pred_check
      %p144 = pneg %p143
    $region18: #{conv2d_block_forward.2} parent=5 // pred_check_branch
      %146 = sbr.rel (%p144) target = $region20
    $region19: #{conv2d_block_forward.2} parent=5 // pred_region
      // Predicated region
      $region21: #{conv2d_block_forward.2} parent=19 // pred_check
        %p147 = pneg %p42
      $region22: #{conv2d_block_forward.2} parent=19 // pred_check_branch
        %149 = sbr.rel (%p147) target = $region24
      $region23: #{conv2d_block_forward.2} parent=19 // pred_region
        %p150 = scmp.lt.s32.totalorder %s17, 1
        %s151 = scalar_select %p150, %s17, 1
        %s152 = smul.addr %s151, 60
        %s153 = smul.addr %s152, 8
        %s154 = scalar_lea.vmem %s0, %s153
      $region24: #{conv2d_block_forward.2} parent=19 // pred_fallthru
        _
    $region20: #{conv2d_block_forward.2} parent=5 // pred_fallthru
      _
    %p155 = scmp.le.s32.totalorder 1, %s10
    %p156 = scmp.lt.s32.totalorder %s10, 5
    %p157 = pnand %p155, %p156
    %p158 = pneg %p157
    // Predicated region
    $region25: #{conv2d_block_forward.2} parent=5 // pred_check
      _
    $region26: #{conv2d_block_forward.2} parent=5 // pred_check_branch
      %160 = sbr.rel (%p157) target = $region28
    $region27: #{conv2d_block_forward.2} parent=5 // pred_region
      %s161 = ssub.s32 %s10, 1
      %p162 = scmp.lt.s32.totalorder %s19, 1
      %s163 = scalar_select %p162, %s19, 1
      %s164 = smul.addr %s163, 60
      %s165 = smul.addr %s164, 8
      %s166 = scalar_lea.vmem %s0, %s165
      %p167 = pneg %p48
      %p168 = pneg %p45
      %p169 = pneg %p69
      %p170 = pneg %p66
      %p171 = pneg %p97
      %p172 = pneg %p94
      %s173 = smul.u32 8, %s20
      %p174 = scmp.lt.s32.totalorder %s19, 1
      %s175 = scalar_select %p174, %s19, 1
      %p176 = scmp.lt.s32.totalorder %s173, 15
      %s177 = scalar_select %p176, %s173, 15
      %s178 = smul.addr %s177, 2
      %s179 = smul.addr %s175, 32
      %s180 = sadd.s32 %s178, %s179
      %s181 = smul.addr %s180, 8
      %s182 = scalar_lea.vmem %s2, %s181
      %p183 = pneg %p125
      %p184 = pneg %p122
      %p185 = scmp.lt.s32.totalorder %s19, 1
      %s186 = scalar_select %p185, %s19, 1
      %p187 = scmp.lt.s32.totalorder %s20, 1
      %s188 = scalar_select %p187, %s20, 1
      %s189 = smul.addr %s186, 2
      %s190 = sadd.s32 %s188, %s189
      %s191 = smul.addr %s190, 2
      %s192 = scalar_lea.vmem %s3, %s191
      %p193 = scmp.lt.s32.totalorder %s19, 1
      %s194 = scalar_select %p193, %s19, 1
      %s195 = smul.addr %s194, 60
      %s196 = smul.addr %s195, 8
      %s197 = scalar_lea.vmem %s0, %s196
      %s198 = smul.u32 8, %s20
      %p199 = scmp.lt.s32.totalorder %s19, 1
      %s200 = scalar_select %p199, %s19, 1
      %p201 = scmp.lt.s32.totalorder %s198, 15
      %s202 = scalar_select %p201, %s198, 15
      %s203 = smul.addr %s202, 2
      %s204 = smul.addr %s200, 32
      %s205 = sadd.s32 %s203, %s204
      %s206 = smul.addr %s205, 8
      %s207 = scalar_lea.vmem %s2, %s206
      %s208 = smul.u32 8, %s20
      %p209 = scmp.lt.s32.totalorder %s19, 1
      %s210 = scalar_select %p209, %s19, 1
      %p211 = scmp.lt.s32.totalorder %s20, 1
      %s212 = scalar_select %p211, %s20, 1
      %s213 = smul.addr %s210, 2
      %s214 = sadd.s32 %s212, %s213
      %s215 = smul.addr %s214, 2
      %s216 = scalar_lea.vmem %s3, %s215
      %s217 = smul.u32 %s20, 8
      %s218 = smul.u32 %s217, 24
      %s219 = scalar_lea.vmem %s197, %s218
      %v220 = vld [vmem:[%s219] sm:$0xff]
      %v221 = vld [vmem:[%s219 + $0x8] sm:$0xff]
      %v222 = vld [vmem:[%s219 + $0x18] sm:$0xff]
      %v223 = vld [vmem:[%s219 + $0x20] sm:$0xff]
      %v224 = vld [vmem:[%s219 + $0x30] sm:$0xff]
      %v225 = vld [vmem:[%s219 + $0x38] sm:$0xff]
      %v226 = vld [vmem:[%s219 + $0x48] sm:$0xff]
      %v227 = vld [vmem:[%s219 + $0x50] sm:$0xff]
      %v228 = vld [vmem:[%s219 + $0x60] sm:$0xff]
      %v229 = vld [vmem:[%s219 + $0x68] sm:$0xff]
      %v230 = vld [vmem:[%s219 + $0x78] sm:$0xff]
      %v231 = vld [vmem:[%s219 + $0x80] sm:$0xff]
      %v232 = vld [vmem:[%s219 + $0x90] sm:$0xff]
      %v233 = vld [vmem:[%s219 + $0x98] sm:$0xff]
      %v234 = vld [vmem:[%s219 + $0xa8] sm:$0xff]
      %v235 = vld [vmem:[%s219 + $0xb0] sm:$0xff]
      %v236 = vld [vmem:[%s219 + $0x1] sm:$0xff]
      %v237 = vld [vmem:[%s219 + $0x9] sm:$0xff]
      %v238 = vld [vmem:[%s219 + $0x19] sm:$0xff]
      %v239 = vld [vmem:[%s219 + $0x21] sm:$0xff]
      %v240 = vld [vmem:[%s219 + $0x31] sm:$0xff]
      %v241 = vld [vmem:[%s219 + $0x39] sm:$0xff]
      %v242 = vld [vmem:[%s219 + $0x49] sm:$0xff]
      %v243 = vld [vmem:[%s219 + $0x51] sm:$0xff]
      %v244 = vld [vmem:[%s219 + $0x61] sm:$0xff]
      %v245 = vld [vmem:[%s219 + $0x69] sm:$0xff]
      %v246 = vld [vmem:[%s219 + $0x79] sm:$0xff]
      %v247 = vld [vmem:[%s219 + $0x81] sm:$0xff]
      %v248 = vld [vmem:[%s219 + $0x91] sm:$0xff]
      %v249 = vld [vmem:[%s219 + $0x99] sm:$0xff]
      %v250 = vld [vmem:[%s219 + $0xa9] sm:$0xff]
      %v251 = vld [vmem:[%s219 + $0xb1] sm:$0xff]
      %v252 = vld [vmem:[%s219 + $0x2] sm:$0xff]
      %v253 = vld [vmem:[%s219 + $0xa] sm:$0xff]
      %v254 = vld [vmem:[%s219 + $0x1a] sm:$0xff]
      %v255 = vld [vmem:[%s219 + $0x22] sm:$0xff]
      %v256 = vld [vmem:[%s219 + $0x32] sm:$0xff]
      %v257 = vld [vmem:[%s219 + $0x3a] sm:$0xff]
      %v258 = vld [vmem:[%s219 + $0x4a] sm:$0xff]
      %v259 = vld [vmem:[%s219 + $0x52] sm:$0xff]
      %v260 = vld [vmem:[%s219 + $0x62] sm:$0xff]
      %v261 = vld [vmem:[%s219 + $0x6a] sm:$0xff]
      %v262 = vld [vmem:[%s219 + $0x7a] sm:$0xff]
      %v263 = vld [vmem:[%s219 + $0x82] sm:$0xff]
      %v264 = vld [vmem:[%s219 + $0x92] sm:$0xff]
      %v265 = vld [vmem:[%s219 + $0x9a] sm:$0xff]
      %v266 = vld [vmem:[%s219 + $0xaa] sm:$0xff]
      %v267 = vld [vmem:[%s219 + $0xb2] sm:$0xff]
      %v268 = vld [vmem:[%s219 + $0x3] sm:$0xff]
      %v269 = vld [vmem:[%s219 + $0xb] sm:$0xff]
      %v270 = vld [vmem:[%s219 + $0x1b] sm:$0xff]
      %v271 = vld [vmem:[%s219 + $0x23] sm:$0xff]
      %v272 = vld [vmem:[%s219 + $0x33] sm:$0xff]
      %v273 = vld [vmem:[%s219 + $0x3b] sm:$0xff]
      %v274 = vld [vmem:[%s219 + $0x4b] sm:$0xff]
      %v275 = vld [vmem:[%s219 + $0x53] sm:$0xff]
      %v276 = vld [vmem:[%s219 + $0x63] sm:$0xff]
      %v277 = vld [vmem:[%s219 + $0x6b] sm:$0xff]
      %v278 = vld [vmem:[%s219 + $0x7b] sm:$0xff]
      %v279 = vld [vmem:[%s219 + $0x83] sm:$0xff]
      %v280 = vld [vmem:[%s219 + $0x93] sm:$0xff]
      %v281 = vld [vmem:[%s219 + $0x9b] sm:$0xff]
      %v282 = vld [vmem:[%s219 + $0xab] sm:$0xff]
      %v283 = vld [vmem:[%s219 + $0xb3] sm:$0xff]
      %v284 = vld [vmem:[%s219 + $0x4] sm:$0xff]
      %v285 = vld [vmem:[%s219 + $0xc] sm:$0xff]
      %v286 = vld [vmem:[%s219 + $0x1c] sm:$0xff]
      %v287 = vld [vmem:[%s219 + $0x24] sm:$0xff]
      %v288 = vld [vmem:[%s219 + $0x34] sm:$0xff]
      %v289 = vld [vmem:[%s219 + $0x3c] sm:$0xff]
      %v290 = vld [vmem:[%s219 + $0x4c] sm:$0xff]
      %v291 = vld [vmem:[%s219 + $0x54] sm:$0xff]
      %v292 = vld [vmem:[%s219 + $0x64] sm:$0xff]
      %v293 = vld [vmem:[%s219 + $0x6c] sm:$0xff]
      %v294 = vld [vmem:[%s219 + $0x7c] sm:$0xff]
      %v295 = vld [vmem:[%s219 + $0x84] sm:$0xff]
      %v296 = vld [vmem:[%s219 + $0x94] sm:$0xff]
      %v297 = vld [vmem:[%s219 + $0x9c] sm:$0xff]
      %v298 = vld [vmem:[%s219 + $0xac] sm:$0xff]
      %v299 = vld [vmem:[%s219 + $0xb4] sm:$0xff]
      %s300 = sadd.s32 %s217, 1
      %s301 = smul.u32 %s300, 24
      %s302 = scalar_lea.vmem %s197, %s301
      %v303 = vld [vmem:[%s302] sm:$0xff]
      %v304 = vld [vmem:[%s302 + $0x8] sm:$0xff]
      %v305 = vld [vmem:[%s302 + $0x18] sm:$0xff]
      %v306 = vld [vmem:[%s302 + $0x20] sm:$0xff]
      %v307 = vld [vmem:[%s302 + $0x30] sm:$0xff]
      %v308 = vld [vmem:[%s302 + $0x38] sm:$0xff]
      %v309 = vld [vmem:[%s302 + $0x48] sm:$0xff]
      %v310 = vld [vmem:[%s302 + $0x50] sm:$0xff]
      %v311 = vld [vmem:[%s302 + $0x60] sm:$0xff]
      %v312 = vld [vmem:[%s302 + $0x68] sm:$0xff]
      %v313 = vld [vmem:[%s302 + $0x78] sm:$0xff]
      %v314 = vld [vmem:[%s302 + $0x80] sm:$0xff]
      %v315 = vld [vmem:[%s302 + $0x90] sm:$0xff]
      %v316 = vld [vmem:[%s302 + $0x98] sm:$0xff]
      %v317 = vld [vmem:[%s302 + $0xa8] sm:$0xff]
      %v318 = vld [vmem:[%s302 + $0xb0] sm:$0xff]
      %v319 = vld [vmem:[%s302 + $0x1] sm:$0xff]
      %v320 = vld [vmem:[%s302 + $0x9] sm:$0xff]
      %v321 = vld [vmem:[%s302 + $0x19] sm:$0xff]
      %v322 = vld [vmem:[%s302 + $0x21] sm:$0xff]
      %v323 = vld [vmem:[%s302 + $0x31] sm:$0xff]
      %v324 = vld [vmem:[%s302 + $0x39] sm:$0xff]
      %v325 = vld [vmem:[%s302 + $0x49] sm:$0xff]
      %v326 = vld [vmem:[%s302 + $0x51] sm:$0xff]
      %v327 = vld [vmem:[%s302 + $0x61] sm:$0xff]
      %v328 = vld [vmem:[%s302 + $0x69] sm:$0xff]
      %v329 = vld [vmem:[%s302 + $0x79] sm:$0xff]
      %v330 = vld [vmem:[%s302 + $0x81] sm:$0xff]
      %v331 = vld [vmem:[%s302 + $0x91] sm:$0xff]
      %v332 = vld [vmem:[%s302 + $0x99] sm:$0xff]
      %v333 = vld [vmem:[%s302 + $0xa9] sm:$0xff]
      %v334 = vld [vmem:[%s302 + $0xb1] sm:$0xff]
      %v335 = vld [vmem:[%s302 + $0x2] sm:$0xff]
      %v336 = vld [vmem:[%s302 + $0xa] sm:$0xff]
      %v337 = vld [vmem:[%s302 + $0x1a] sm:$0xff]
      %v338 = vld [vmem:[%s302 + $0x22] sm:$0xff]
      %v339 = vld [vmem:[%s302 + $0x32] sm:$0xff]
      %v340 = vld [vmem:[%s302 + $0x3a] sm:$0xff]
      %v341 = vld [vmem:[%s302 + $0x4a] sm:$0xff]
      %v342 = vld [vmem:[%s302 + $0x52] sm:$0xff]
      %v343 = vld [vmem:[%s302 + $0x62] sm:$0xff]
      %v344 = vld [vmem:[%s302 + $0x6a] sm:$0xff]
      %v345 = vld [vmem:[%s302 + $0x7a] sm:$0xff]
      %v346 = vld [vmem:[%s302 + $0x82] sm:$0xff]
      %v347 = vld [vmem:[%s302 + $0x92] sm:$0xff]
      %v348 = vld [vmem:[%s302 + $0x9a] sm:$0xff]
      %v349 = vld [vmem:[%s302 + $0xaa] sm:$0xff]
      %v350 = vld [vmem:[%s302 + $0xb2] sm:$0xff]
      %v351 = vld [vmem:[%s302 + $0x3] sm:$0xff]
      %v352 = vld [vmem:[%s302 + $0xb] sm:$0xff]
      %v353 = vld [vmem:[%s302 + $0x1b] sm:$0xff]
      %v354 = vld [vmem:[%s302 + $0x23] sm:$0xff]
      %v355 = vld [vmem:[%s302 + $0x33] sm:$0xff]
      %v356 = vld [vmem:[%s302 + $0x3b] sm:$0xff]
      %v357 = vld [vmem:[%s302 + $0x4b] sm:$0xff]
      %v358 = vld [vmem:[%s302 + $0x53] sm:$0xff]
      %v359 = vld [vmem:[%s302 + $0x63] sm:$0xff]
      %v360 = vld [vmem:[%s302 + $0x6b] sm:$0xff]
      %v361 = vld [vmem:[%s302 + $0x7b] sm:$0xff]
      %v362 = vld [vmem:[%s302 + $0x83] sm:$0xff]
      %v363 = vld [vmem:[%s302 + $0x93] sm:$0xff]
      %v364 = vld [vmem:[%s302 + $0x9b] sm:$0xff]
      %v365 = vld [vmem:[%s302 + $0xab] sm:$0xff]
      %v366 = vld [vmem:[%s302 + $0xb3] sm:$0xff]
      %v367 = vld [vmem:[%s302 + $0x4] sm:$0xff]
      %v368 = vld [vmem:[%s302 + $0xc] sm:$0xff]
      %v369 = vld [vmem:[%s302 + $0x1c] sm:$0xff]
      %v370 = vld [vmem:[%s302 + $0x24] sm:$0xff]
      %v371 = vld [vmem:[%s302 + $0x34] sm:$0xff]
      %v372 = vld [vmem:[%s302 + $0x3c] sm:$0xff]
      %v373 = vld [vmem:[%s302 + $0x4c] sm:$0xff]
      %v374 = vld [vmem:[%s302 + $0x54] sm:$0xff]
      %v375 = vld [vmem:[%s302 + $0x64] sm:$0xff]
      %v376 = vld [vmem:[%s302 + $0x6c] sm:$0xff]
      %v377 = vld [vmem:[%s302 + $0x7c] sm:$0xff]
      %v378 = vld [vmem:[%s302 + $0x84] sm:$0xff]
      %v379 = vld [vmem:[%s302 + $0x94] sm:$0xff]
      %v380 = vld [vmem:[%s302 + $0x9c] sm:$0xff]
      %v381 = vld [vmem:[%s302 + $0xac] sm:$0xff]
      %v382 = vld [vmem:[%s302 + $0xb4] sm:$0xff]
      %s383 = sadd.s32 %s217, 2
      %s384 = smul.u32 %s383, 24
      %s385 = scalar_lea.vmem %s197, %s384
      %v386 = vld [vmem:[%s385] sm:$0xff]
      %v387 = vld [vmem:[%s385 + $0x8] sm:$0xff]
      %v388 = vld [vmem:[%s385 + $0x18] sm:$0xff]
      %v389 = vld [vmem:[%s385 + $0x20] sm:$0xff]
      %v390 = vld [vmem:[%s385 + $0x30] sm:$0xff]
      %v391 = vld [vmem:[%s385 + $0x38] sm:$0xff]
      %v392 = vld [vmem:[%s385 + $0x48] sm:$0xff]
      %v393 = vld [vmem:[%s385 + $0x50] sm:$0xff]
      %v394 = vld [vmem:[%s385 + $0x60] sm:$0xff]
      %v395 = vld [vmem:[%s385 + $0x68] sm:$0xff]
      %v396 = vld [vmem:[%s385 + $0x78] sm:$0xff]
      %v397 = vld [vmem:[%s385 + $0x80] sm:$0xff]
      %v398 = vld [vmem:[%s385 + $0x90] sm:$0xff]
      %v399 = vld [vmem:[%s385 + $0x98] sm:$0xff]
      %v400 = vld [vmem:[%s385 + $0xa8] sm:$0xff]
      %v401 = vld [vmem:[%s385 + $0xb0] sm:$0xff]
      %v402 = vld [vmem:[%s385 + $0x1] sm:$0xff]
      %v403 = vld [vmem:[%s385 + $0x9] sm:$0xff]
      %v404 = vld [vmem:[%s385 + $0x19] sm:$0xff]
      %v405 = vld [vmem:[%s385 + $0x21] sm:$0xff]
      %v406 = vld [vmem:[%s385 + $0x31] sm:$0xff]
      %v407 = vld [vmem:[%s385 + $0x39] sm:$0xff]
      %v408 = vld [vmem:[%s385 + $0x49] sm:$0xff]
      %v409 = vld [vmem:[%s385 + $0x51] sm:$0xff]
      %v410 = vld [vmem:[%s385 + $0x61] sm:$0xff]
      %v411 = vld [vmem:[%s385 + $0x69] sm:$0xff]
      %v412 = vld [vmem:[%s385 + $0x79] sm:$0xff]
      %v413 = vld [vmem:[%s385 + $0x81] sm:$0xff]
      %v414 = vld [vmem:[%s385 + $0x91] sm:$0xff]
      %v415 = vld [vmem:[%s385 + $0x99] sm:$0xff]
      %v416 = vld [vmem:[%s385 + $0xa9] sm:$0xff]
      %v417 = vld [vmem:[%s385 + $0xb1] sm:$0xff]
      %v418 = vld [vmem:[%s385 + $0x2] sm:$0xff]
      %v419 = vld [vmem:[%s385 + $0xa] sm:$0xff]
      %v420 = vld [vmem:[%s385 + $0x1a] sm:$0xff]
      %v421 = vld [vmem:[%s385 + $0x22] sm:$0xff]
      %v422 = vld [vmem:[%s385 + $0x32] sm:$0xff]
      %v423 = vld [vmem:[%s385 + $0x3a] sm:$0xff]
      %v424 = vld [vmem:[%s385 + $0x4a] sm:$0xff]
      %v425 = vld [vmem:[%s385 + $0x52] sm:$0xff]
      %v426 = vld [vmem:[%s385 + $0x62] sm:$0xff]
      %v427 = vld [vmem:[%s385 + $0x6a] sm:$0xff]
      %v428 = vld [vmem:[%s385 + $0x7a] sm:$0xff]
      %v429 = vld [vmem:[%s385 + $0x82] sm:$0xff]
      %v430 = vld [vmem:[%s385 + $0x92] sm:$0xff]
      %v431 = vld [vmem:[%s385 + $0x9a] sm:$0xff]
      %v432 = vld [vmem:[%s385 + $0xaa] sm:$0xff]
      %v433 = vld [vmem:[%s385 + $0xb2] sm:$0xff]
      %v434 = vld [vmem:[%s385 + $0x3] sm:$0xff]
      %v435 = vld [vmem:[%s385 + $0xb] sm:$0xff]
      %v436 = vld [vmem:[%s385 + $0x1b] sm:$0xff]
      %v437 = vld [vmem:[%s385 + $0x23] sm:$0xff]
      %v438 = vld [vmem:[%s385 + $0x33] sm:$0xff]
      %v439 = vld [vmem:[%s385 + $0x3b] sm:$0xff]
      %v440 = vld [vmem:[%s385 + $0x4b] sm:$0xff]
      %v441 = vld [vmem:[%s385 + $0x53] sm:$0xff]
      %v442 = vld [vmem:[%s385 + $0x63] sm:$0xff]
      %v443 = vld [vmem:[%s385 + $0x6b] sm:$0xff]
      %v444 = vld [vmem:[%s385 + $0x7b] sm:$0xff]
      %v445 = vld [vmem:[%s385 + $0x83] sm:$0xff]
      %v446 = vld [vmem:[%s385 + $0x93] sm:$0xff]
      %v447 = vld [vmem:[%s385 + $0x9b] sm:$0xff]
      %v448 = vld [vmem:[%s385 + $0xab] sm:$0xff]
      %v449 = vld [vmem:[%s385 + $0xb3] sm:$0xff]
      %v450 = vld [vmem:[%s385 + $0x4] sm:$0xff]
      %v451 = vld [vmem:[%s385 + $0xc] sm:$0xff]
      %v452 = vld [vmem:[%s385 + $0x1c] sm:$0xff]
      %v453 = vld [vmem:[%s385 + $0x24] sm:$0xff]
      %v454 = vld [vmem:[%s385 + $0x34] sm:$0xff]
      %v455 = vld [vmem:[%s385 + $0x3c] sm:$0xff]
      %v456 = vld [vmem:[%s385 + $0x4c] sm:$0xff]
      %v457 = vld [vmem:[%s385 + $0x54] sm:$0xff]
      %v458 = vld [vmem:[%s385 + $0x64] sm:$0xff]
      %v459 = vld [vmem:[%s385 + $0x6c] sm:$0xff]
      %v460 = vld [vmem:[%s385 + $0x7c] sm:$0xff]
      %v461 = vld [vmem:[%s385 + $0x84] sm:$0xff]
      %v462 = vld [vmem:[%s385 + $0x94] sm:$0xff]
      %v463 = vld [vmem:[%s385 + $0x9c] sm:$0xff]
      %v464 = vld [vmem:[%s385 + $0xac] sm:$0xff]
      %v465 = vld [vmem:[%s385 + $0xb4] sm:$0xff]
      %s466 = sadd.s32 %s217, 3
      %s467 = smul.u32 %s466, 24
      %s468 = scalar_lea.vmem %s197, %s467
      %v469 = vld [vmem:[%s468] sm:$0xff]
      %v470 = vld [vmem:[%s468 + $0x8] sm:$0xff]
      %v471 = vld [vmem:[%s468 + $0x18] sm:$0xff]
      %v472 = vld [vmem:[%s468 + $0x20] sm:$0xff]
      %v473 = vld [vmem:[%s468 + $0x30] sm:$0xff]
      %v474 = vld [vmem:[%s468 + $0x38] sm:$0xff]
      %v475 = vld [vmem:[%s468 + $0x48] sm:$0xff]
      %v476 = vld [vmem:[%s468 + $0x50] sm:$0xff]
      %v477 = vld [vmem:[%s468 + $0x60] sm:$0xff]
      %v478 = vld [vmem:[%s468 + $0x68] sm:$0xff]
      %v479 = vld [vmem:[%s468 + $0x78] sm:$0xff]
      %v480 = vld [vmem:[%s468 + $0x80] sm:$0xff]
      %v481 = vld [vmem:[%s468 + $0x90] sm:$0xff]
      %v482 = vld [vmem:[%s468 + $0x98] sm:$0xff]
      %v483 = vld [vmem:[%s468 + $0xa8] sm:$0xff]
      %v484 = vld [vmem:[%s468 + $0xb0] sm:$0xff]
      %v485 = vld [vmem:[%s468 + $0x1] sm:$0xff]
      %v486 = vld [vmem:[%s468 + $0x9] sm:$0xff]
      %v487 = vld [vmem:[%s468 + $0x19] sm:$0xff]
      %v488 = vld [vmem:[%s468 + $0x21] sm:$0xff]
      %v489 = vld [vmem:[%s468 + $0x31] sm:$0xff]
      %v490 = vld [vmem:[%s468 + $0x39] sm:$0xff]
      %v491 = vld [vmem:[%s468 + $0x49] sm:$0xff]
      %v492 = vld [vmem:[%s468 + $0x51] sm:$0xff]
      %v493 = vld [vmem:[%s468 + $0x61] sm:$0xff]
      %v494 = vld [vmem:[%s468 + $0x69] sm:$0xff]
      %v495 = vld [vmem:[%s468 + $0x79] sm:$0xff]
      %v496 = vld [vmem:[%s468 + $0x81] sm:$0xff]
      %v497 = vld [vmem:[%s468 + $0x91] sm:$0xff]
      %v498 = vld [vmem:[%s468 + $0x99] sm:$0xff]
      %v499 = vld [vmem:[%s468 + $0xa9] sm:$0xff]
      %v500 = vld [vmem:[%s468 + $0xb1] sm:$0xff]
      %v501 = vld [vmem:[%s468 + $0x2] sm:$0xff]
      %v502 = vld [vmem:[%s468 + $0xa] sm:$0xff]
      %v503 = vld [vmem:[%s468 + $0x1a] sm:$0xff]
      %v504 = vld [vmem:[%s468 + $0x22] sm:$0xff]
      %v505 = vld [vmem:[%s468 + $0x32] sm:$0xff]
      %v506 = vld [vmem:[%s468 + $0x3a] sm:$0xff]
      %v507 = vld [vmem:[%s468 + $0x4a] sm:$0xff]
      %v508 = vld [vmem:[%s468 + $0x52] sm:$0xff]
      %v509 = vld [vmem:[%s468 + $0x62] sm:$0xff]
      %v510 = vld [vmem:[%s468 + $0x6a] sm:$0xff]
      %v511 = vld [vmem:[%s468 + $0x7a] sm:$0xff]
      %v512 = vld [vmem:[%s468 + $0x82] sm:$0xff]
      %v513 = vld [vmem:[%s468 + $0x92] sm:$0xff]
      %v514 = vld [vmem:[%s468 + $0x9a] sm:$0xff]
      %v515 = vld [vmem:[%s468 + $0xaa] sm:$0xff]
      %v516 = vld [vmem:[%s468 + $0xb2] sm:$0xff]
      %v517 = vld [vmem:[%s468 + $0x3] sm:$0xff]
      %v518 = vld [vmem:[%s468 + $0xb] sm:$0xff]
      %v519 = vld [vmem:[%s468 + $0x1b] sm:$0xff]
      %v520 = vld [vmem:[%s468 + $0x23] sm:$0xff]
      %v521 = vld [vmem:[%s468 + $0x33] sm:$0xff]
      %v522 = vld [vmem:[%s468 + $0x3b] sm:$0xff]
      %v523 = vld [vmem:[%s468 + $0x4b] sm:$0xff]
      %v524 = vld [vmem:[%s468 + $0x53] sm:$0xff]
      %v525 = vld [vmem:[%s468 + $0x63] sm:$0xff]
      %v526 = vld [vmem:[%s468 + $0x6b] sm:$0xff]
      %v527 = vld [vmem:[%s468 + $0x7b] sm:$0xff]
      %v528 = vld [vmem:[%s468 + $0x83] sm:$0xff]
      %v529 = vld [vmem:[%s468 + $0x93] sm:$0xff]
      %v530 = vld [vmem:[%s468 + $0x9b] sm:$0xff]
      %v531 = vld [vmem:[%s468 + $0xab] sm:$0xff]
      %v532 = vld [vmem:[%s468 + $0xb3] sm:$0xff]
      %v533 = vld [vmem:[%s468 + $0x4] sm:$0xff]
      %v534 = vld [vmem:[%s468 + $0xc] sm:$0xff]
      %v535 = vld [vmem:[%s468 + $0x1c] sm:$0xff]
      %v536 = vld [vmem:[%s468 + $0x24] sm:$0xff]
      %v537 = vld [vmem:[%s468 + $0x34] sm:$0xff]
      %v538 = vld [vmem:[%s468 + $0x3c] sm:$0xff]
      %v539 = vld [vmem:[%s468 + $0x4c] sm:$0xff]
      %v540 = vld [vmem:[%s468 + $0x54] sm:$0xff]
      %v541 = vld [vmem:[%s468 + $0x64] sm:$0xff]
      %v542 = vld [vmem:[%s468 + $0x6c] sm:$0xff]
      %v543 = vld [vmem:[%s468 + $0x7c] sm:$0xff]
      %v544 = vld [vmem:[%s468 + $0x84] sm:$0xff]
      %v545 = vld [vmem:[%s468 + $0x94] sm:$0xff]
      %v546 = vld [vmem:[%s468 + $0x9c] sm:$0xff]
      %v547 = vld [vmem:[%s468 + $0xac] sm:$0xff]
      %v548 = vld [vmem:[%s468 + $0xb4] sm:$0xff]
      %s549 = sadd.s32 %s217, 4
      %s550 = smul.u32 %s549, 24
      %s551 = scalar_lea.vmem %s197, %s550
      %v552 = vld [vmem:[%s551] sm:$0xff]
      %v553 = vld [vmem:[%s551 + $0x8] sm:$0xff]
      %v554 = vld [vmem:[%s551 + $0x18] sm:$0xff]
      %v555 = vld [vmem:[%s551 + $0x20] sm:$0xff]
      %v556 = vld [vmem:[%s551 + $0x30] sm:$0xff]
      %v557 = vld [vmem:[%s551 + $0x38] sm:$0xff]
      %v558 = vld [vmem:[%s551 + $0x48] sm:$0xff]
      %v559 = vld [vmem:[%s551 + $0x50] sm:$0xff]
      %v560 = vld [vmem:[%s551 + $0x60] sm:$0xff]
      %v561 = vld [vmem:[%s551 + $0x68] sm:$0xff]
      %v562 = vld [vmem:[%s551 + $0x78] sm:$0xff]
      %v563 = vld [vmem:[%s551 + $0x80] sm:$0xff]
      %v564 = vld [vmem:[%s551 + $0x90] sm:$0xff]
      %v565 = vld [vmem:[%s551 + $0x98] sm:$0xff]
      %v566 = vld [vmem:[%s551 + $0xa8] sm:$0xff]
      %v567 = vld [vmem:[%s551 + $0xb0] sm:$0xff]
      %v568 = vld [vmem:[%s551 + $0x1] sm:$0xff]
      %v569 = vld [vmem:[%s551 + $0x9] sm:$0xff]
      %v570 = vld [vmem:[%s551 + $0x19] sm:$0xff]
      %v571 = vld [vmem:[%s551 + $0x21] sm:$0xff]
      %v572 = vld [vmem:[%s551 + $0x31] sm:$0xff]
      %v573 = vld [vmem:[%s551 + $0x39] sm:$0xff]
      %v574 = vld [vmem:[%s551 + $0x49] sm:$0xff]
      %v575 = vld [vmem:[%s551 + $0x51] sm:$0xff]
      %v576 = vld [vmem:[%s551 + $0x61] sm:$0xff]
      %v577 = vld [vmem:[%s551 + $0x69] sm:$0xff]
      %v578 = vld [vmem:[%s551 + $0x79] sm:$0xff]
      %v579 = vld [vmem:[%s551 + $0x81] sm:$0xff]
      %v580 = vld [vmem:[%s551 + $0x91] sm:$0xff]
      %v581 = vld [vmem:[%s551 + $0x99] sm:$0xff]
      %v582 = vld [vmem:[%s551 + $0xa9] sm:$0xff]
      %v583 = vld [vmem:[%s551 + $0xb1] sm:$0xff]
      %v584 = vld [vmem:[%s551 + $0x2] sm:$0xff]
      %v585 = vld [vmem:[%s551 + $0xa] sm:$0xff]
      %v586 = vld [vmem:[%s551 + $0x1a] sm:$0xff]
      %v587 = vld [vmem:[%s551 + $0x22] sm:$0xff]
      %v588 = vld [vmem:[%s551 + $0x32] sm:$0xff]
      %v589 = vld [vmem:[%s551 + $0x3a] sm:$0xff]
      %v590 = vld [vmem:[%s551 + $0x4a] sm:$0xff]
      %v591 = vld [vmem:[%s551 + $0x52] sm:$0xff]
      %v592 = vld [vmem:[%s551 + $0x62] sm:$0xff]
      %v593 = vld [vmem:[%s551 + $0x6a] sm:$0xff]
      %v594 = vld [vmem:[%s551 + $0x7a] sm:$0xff]
      %v595 = vld [vmem:[%s551 + $0x82] sm:$0xff]
      %v596 = vld [vmem:[%s551 + $0x92] sm:$0xff]
      %v597 = vld [vmem:[%s551 + $0x9a] sm:$0xff]
      %v598 = vld [vmem:[%s551 + $0xaa] sm:$0xff]
      %v599 = vld [vmem:[%s551 + $0xb2] sm:$0xff]
      %v600 = vld [vmem:[%s551 + $0x3] sm:$0xff]
      %v601 = vld [vmem:[%s551 + $0xb] sm:$0xff]
      %v602 = vld [vmem:[%s551 + $0x1b] sm:$0xff]
      %v603 = vld [vmem:[%s551 + $0x23] sm:$0xff]
      %v604 = vld [vmem:[%s551 + $0x33] sm:$0xff]
      %v605 = vld [vmem:[%s551 + $0x3b] sm:$0xff]
      %v606 = vld [vmem:[%s551 + $0x4b] sm:$0xff]
      %v607 = vld [vmem:[%s551 + $0x53] sm:$0xff]
      %v608 = vld [vmem:[%s551 + $0x63] sm:$0xff]
      %v609 = vld [vmem:[%s551 + $0x6b] sm:$0xff]
      %v610 = vld [vmem:[%s551 + $0x7b] sm:$0xff]
      %v611 = vld [vmem:[%s551 + $0x83] sm:$0xff]
      %v612 = vld [vmem:[%s551 + $0x93] sm:$0xff]
      %v613 = vld [vmem:[%s551 + $0x9b] sm:$0xff]
      %v614 = vld [vmem:[%s551 + $0xab] sm:$0xff]
      %v615 = vld [vmem:[%s551 + $0xb3] sm:$0xff]
      %v616 = vld [vmem:[%s551 + $0x4] sm:$0xff]
      %v617 = vld [vmem:[%s551 + $0xc] sm:$0xff]
      %v618 = vld [vmem:[%s551 + $0x1c] sm:$0xff]
      %v619 = vld [vmem:[%s551 + $0x24] sm:$0xff]
      %v620 = vld [vmem:[%s551 + $0x34] sm:$0xff]
      %v621 = vld [vmem:[%s551 + $0x3c] sm:$0xff]
      %v622 = vld [vmem:[%s551 + $0x4c] sm:$0xff]
      %v623 = vld [vmem:[%s551 + $0x54] sm:$0xff]
      %v624 = vld [vmem:[%s551 + $0x64] sm:$0xff]
      %v625 = vld [vmem:[%s551 + $0x6c] sm:$0xff]
      %v626 = vld [vmem:[%s551 + $0x7c] sm:$0xff]
      %v627 = vld [vmem:[%s551 + $0x84] sm:$0xff]
      %v628 = vld [vmem:[%s551 + $0x94] sm:$0xff]
      %v629 = vld [vmem:[%s551 + $0x9c] sm:$0xff]
      %v630 = vld [vmem:[%s551 + $0xac] sm:$0xff]
      %v631 = vld [vmem:[%s551 + $0xb4] sm:$0xff]
      %648 = vrot.lane.b32.xlu0 %v236, 4
      %v649 = vpop.permute.xlu0 %648
      %650 = vrot.lane.b32.xlu0 %v237, 4
      %v651 = vpop.permute.xlu0 %650
      %652 = vrot.lane.b32.xlu0 %v238, 4
      %v653 = vpop.permute.xlu0 %652
      %654 = vrot.lane.b32.xlu0 %v239, 4
      %v655 = vpop.permute.xlu0 %654
      %656 = vrot.lane.b32.xlu0 %v240, 4
      %v657 = vpop.permute.xlu0 %656
      %658 = vrot.lane.b32.xlu0 %v241, 4
      %v659 = vpop.permute.xlu0 %658
      %660 = vrot.lane.b32.xlu0 %v242, 4
      %v661 = vpop.permute.xlu0 %660
      %662 = vrot.lane.b32.xlu0 %v243, 4
      %v663 = vpop.permute.xlu0 %662
      %664 = vrot.lane.b32.xlu0 %v244, 4
      %v665 = vpop.permute.xlu0 %664
      %666 = vrot.lane.b32.xlu0 %v245, 4
      %v667 = vpop.permute.xlu0 %666
      %668 = vrot.lane.b32.xlu0 %v246, 4
      %v669 = vpop.permute.xlu0 %668
      %670 = vrot.lane.b32.xlu0 %v247, 4
      %v671 = vpop.permute.xlu0 %670
      %672 = vrot.lane.b32.xlu0 %v248, 4
      %v673 = vpop.permute.xlu0 %672
      %674 = vrot.lane.b32.xlu0 %v249, 4
      %v675 = vpop.permute.xlu0 %674
      %676 = vrot.lane.b32.xlu0 %v250, 4
      %v677 = vpop.permute.xlu0 %676
      %678 = vrot.lane.b32.xlu0 %v251, 4
      %v679 = vpop.permute.xlu0 %678
      %712 = vrot.lane.b32.xlu0 %v252, 8
      %v713 = vpop.permute.xlu0 %712
      %714 = vrot.lane.b32.xlu0 %v253, 8
      %v715 = vpop.permute.xlu0 %714
      %716 = vrot.lane.b32.xlu0 %v254, 8
      %v717 = vpop.permute.xlu0 %716
      %718 = vrot.lane.b32.xlu0 %v255, 8
      %v719 = vpop.permute.xlu0 %718
      %720 = vrot.lane.b32.xlu0 %v256, 8
      %v721 = vpop.permute.xlu0 %720
      %722 = vrot.lane.b32.xlu0 %v257, 8
      %v723 = vpop.permute.xlu0 %722
      %724 = vrot.lane.b32.xlu0 %v258, 8
      %v725 = vpop.permute.xlu0 %724
      %726 = vrot.lane.b32.xlu0 %v259, 8
      %v727 = vpop.permute.xlu0 %726
      %728 = vrot.lane.b32.xlu0 %v260, 8
      %v729 = vpop.permute.xlu0 %728
      %730 = vrot.lane.b32.xlu0 %v261, 8
      %v731 = vpop.permute.xlu0 %730
      %732 = vrot.lane.b32.xlu0 %v262, 8
      %v733 = vpop.permute.xlu0 %732
      %734 = vrot.lane.b32.xlu0 %v263, 8
      %v735 = vpop.permute.xlu0 %734
      %736 = vrot.lane.b32.xlu0 %v264, 8
      %v737 = vpop.permute.xlu0 %736
      %738 = vrot.lane.b32.xlu0 %v265, 8
      %v739 = vpop.permute.xlu0 %738
      %740 = vrot.lane.b32.xlu0 %v266, 8
      %v741 = vpop.permute.xlu0 %740
      %742 = vrot.lane.b32.xlu0 %v267, 8
      %v743 = vpop.permute.xlu0 %742
      %776 = vrot.lane.b32.xlu0 %v268, 12
      %v777 = vpop.permute.xlu0 %776
      %778 = vrot.lane.b32.xlu0 %v269, 12
      %v779 = vpop.permute.xlu0 %778
      %780 = vrot.lane.b32.xlu0 %v270, 12
      %v781 = vpop.permute.xlu0 %780
      %782 = vrot.lane.b32.xlu0 %v271, 12
      %v783 = vpop.permute.xlu0 %782
      %784 = vrot.lane.b32.xlu0 %v272, 12
      %v785 = vpop.permute.xlu0 %784
      %786 = vrot.lane.b32.xlu0 %v273, 12
      %v787 = vpop.permute.xlu0 %786
      %788 = vrot.lane.b32.xlu0 %v274, 12
      %v789 = vpop.permute.xlu0 %788
      %790 = vrot.lane.b32.xlu0 %v275, 12
      %v791 = vpop.permute.xlu0 %790
      %792 = vrot.lane.b32.xlu0 %v276, 12
      %v793 = vpop.permute.xlu0 %792
      %794 = vrot.lane.b32.xlu0 %v277, 12
      %v795 = vpop.permute.xlu0 %794
      %796 = vrot.lane.b32.xlu0 %v278, 12
      %v797 = vpop.permute.xlu0 %796
      %798 = vrot.lane.b32.xlu0 %v279, 12
      %v799 = vpop.permute.xlu0 %798
      %800 = vrot.lane.b32.xlu0 %v280, 12
      %v801 = vpop.permute.xlu0 %800
      %802 = vrot.lane.b32.xlu0 %v281, 12
      %v803 = vpop.permute.xlu0 %802
      %804 = vrot.lane.b32.xlu0 %v282, 12
      %v805 = vpop.permute.xlu0 %804
      %806 = vrot.lane.b32.xlu0 %v283, 12
      %v807 = vpop.permute.xlu0 %806
      %840 = vrot.lane.b32.xlu0 %v284, 16
      %v841 = vpop.permute.xlu0 %840
      %842 = vrot.lane.b32.xlu0 %v285, 16
      %v843 = vpop.permute.xlu0 %842
      %844 = vrot.lane.b32.xlu0 %v286, 16
      %v845 = vpop.permute.xlu0 %844
      %846 = vrot.lane.b32.xlu0 %v287, 16
      %v847 = vpop.permute.xlu0 %846
      %848 = vrot.lane.b32.xlu0 %v288, 16
      %v849 = vpop.permute.xlu0 %848
      %850 = vrot.lane.b32.xlu0 %v289, 16
      %v851 = vpop.permute.xlu0 %850
      %852 = vrot.lane.b32.xlu0 %v290, 16
      %v853 = vpop.permute.xlu0 %852
      %854 = vrot.lane.b32.xlu0 %v291, 16
      %v855 = vpop.permute.xlu0 %854
      %856 = vrot.lane.b32.xlu0 %v292, 16
      %v857 = vpop.permute.xlu0 %856
      %858 = vrot.lane.b32.xlu0 %v293, 16
      %v859 = vpop.permute.xlu0 %858
      %860 = vrot.lane.b32.xlu0 %v294, 16
      %v861 = vpop.permute.xlu0 %860
      %862 = vrot.lane.b32.xlu0 %v295, 16
      %v863 = vpop.permute.xlu0 %862
      %864 = vrot.lane.b32.xlu0 %v296, 16
      %v865 = vpop.permute.xlu0 %864
      %866 = vrot.lane.b32.xlu0 %v297, 16
      %v867 = vpop.permute.xlu0 %866
      %868 = vrot.lane.b32.xlu0 %v298, 16
      %v869 = vpop.permute.xlu0 %868
      %870 = vrot.lane.b32.xlu0 %v299, 16
      %v871 = vpop.permute.xlu0 %870
      %904 = vrot.lane.b32.xlu0 %v303, 20
      %v905 = vpop.permute.xlu0 %904
      %906 = vrot.lane.b32.xlu0 %v304, 20
      %v907 = vpop.permute.xlu0 %906
      %908 = vrot.lane.b32.xlu0 %v305, 20
      %v909 = vpop.permute.xlu0 %908
      %910 = vrot.lane.b32.xlu0 %v306, 20
      %v911 = vpop.permute.xlu0 %910
      %912 = vrot.lane.b32.xlu0 %v307, 20
      %v913 = vpop.permute.xlu0 %912
      %914 = vrot.lane.b32.xlu0 %v308, 20
      %v915 = vpop.permute.xlu0 %914
      %916 = vrot.lane.b32.xlu0 %v309, 20
      %v917 = vpop.permute.xlu0 %916
      %918 = vrot.lane.b32.xlu0 %v310, 20
      %v919 = vpop.permute.xlu0 %918
      %920 = vrot.lane.b32.xlu0 %v311, 20
      %v921 = vpop.permute.xlu0 %920
      %922 = vrot.lane.b32.xlu0 %v312, 20
      %v923 = vpop.permute.xlu0 %922
      %924 = vrot.lane.b32.xlu0 %v313, 20
      %v925 = vpop.permute.xlu0 %924
      %926 = vrot.lane.b32.xlu0 %v314, 20
      %v927 = vpop.permute.xlu0 %926
      %928 = vrot.lane.b32.xlu0 %v315, 20
      %v929 = vpop.permute.xlu0 %928
      %930 = vrot.lane.b32.xlu0 %v316, 20
      %v931 = vpop.permute.xlu0 %930
      %932 = vrot.lane.b32.xlu0 %v317, 20
      %v933 = vpop.permute.xlu0 %932
      %934 = vrot.lane.b32.xlu0 %v318, 20
      %v935 = vpop.permute.xlu0 %934
      %968 = vrot.lane.b32.xlu0 %v319, 24
      %v969 = vpop.permute.xlu0 %968
      %970 = vrot.lane.b32.xlu0 %v320, 24
      %v971 = vpop.permute.xlu0 %970
      %972 = vrot.lane.b32.xlu0 %v321, 24
      %v973 = vpop.permute.xlu0 %972
      %974 = vrot.lane.b32.xlu0 %v322, 24
      %v975 = vpop.permute.xlu0 %974
      %976 = vrot.lane.b32.xlu0 %v323, 24
      %v977 = vpop.permute.xlu0 %976
      %978 = vrot.lane.b32.xlu0 %v324, 24
      %v979 = vpop.permute.xlu0 %978
      %980 = vrot.lane.b32.xlu0 %v325, 24
      %v981 = vpop.permute.xlu0 %980
      %982 = vrot.lane.b32.xlu0 %v326, 24
      %v983 = vpop.permute.xlu0 %982
      %984 = vrot.lane.b32.xlu0 %v327, 24
      %v985 = vpop.permute.xlu0 %984
      %986 = vrot.lane.b32.xlu0 %v328, 24
      %v987 = vpop.permute.xlu0 %986
      %988 = vrot.lane.b32.xlu0 %v329, 24
      %v989 = vpop.permute.xlu0 %988
      %990 = vrot.lane.b32.xlu0 %v330, 24
      %v991 = vpop.permute.xlu0 %990
      %992 = vrot.lane.b32.xlu0 %v331, 24
      %v993 = vpop.permute.xlu0 %992
      %994 = vrot.lane.b32.xlu0 %v332, 24
      %v995 = vpop.permute.xlu0 %994
      %996 = vrot.lane.b32.xlu0 %v333, 24
      %v997 = vpop.permute.xlu0 %996
      %998 = vrot.lane.b32.xlu0 %v334, 24
      %v999 = vpop.permute.xlu0 %998
      %1032 = vrot.lane.b32.xlu0 %v335, 28
      %v1033 = vpop.permute.xlu0 %1032
      %1034 = vrot.lane.b32.xlu0 %v336, 28
      %v1035 = vpop.permute.xlu0 %1034
      %1036 = vrot.lane.b32.xlu0 %v337, 28
      %v1037 = vpop.permute.xlu0 %1036
      %1038 = vrot.lane.b32.xlu0 %v338, 28
      %v1039 = vpop.permute.xlu0 %1038
      %1040 = vrot.lane.b32.xlu0 %v339, 28
      %v1041 = vpop.permute.xlu0 %1040
      %1042 = vrot.lane.b32.xlu0 %v340, 28
      %v1043 = vpop.permute.xlu0 %1042
      %1044 = vrot.lane.b32.xlu0 %v341, 28
      %v1045 = vpop.permute.xlu0 %1044
      %1046 = vrot.lane.b32.xlu0 %v342, 28
      %v1047 = vpop.permute.xlu0 %1046
      %1048 = vrot.lane.b32.xlu0 %v343, 28
      %v1049 = vpop.permute.xlu0 %1048
      %1050 = vrot.lane.b32.xlu0 %v344, 28
      %v1051 = vpop.permute.xlu0 %1050
      %1052 = vrot.lane.b32.xlu0 %v345, 28
      %v1053 = vpop.permute.xlu0 %1052
      %1054 = vrot.lane.b32.xlu0 %v346, 28
      %v1055 = vpop.permute.xlu0 %1054
      %1056 = vrot.lane.b32.xlu0 %v347, 28
      %v1057 = vpop.permute.xlu0 %1056
      %1058 = vrot.lane.b32.xlu0 %v348, 28
      %v1059 = vpop.permute.xlu0 %1058
      %1060 = vrot.lane.b32.xlu0 %v349, 28
      %v1061 = vpop.permute.xlu0 %1060
      %1062 = vrot.lane.b32.xlu0 %v350, 28
      %v1063 = vpop.permute.xlu0 %1062
      %1096 = vrot.lane.b32.xlu0 %v351, 32
      %v1097 = vpop.permute.xlu0 %1096
      %1098 = vrot.lane.b32.xlu0 %v352, 32
      %v1099 = vpop.permute.xlu0 %1098
      %1100 = vrot.lane.b32.xlu0 %v353, 32
      %v1101 = vpop.permute.xlu0 %1100
      %1102 = vrot.lane.b32.xlu0 %v354, 32
      %v1103 = vpop.permute.xlu0 %1102
      %1104 = vrot.lane.b32.xlu0 %v355, 32
      %v1105 = vpop.permute.xlu0 %1104
      %1106 = vrot.lane.b32.xlu0 %v356, 32
      %v1107 = vpop.permute.xlu0 %1106
      %1108 = vrot.lane.b32.xlu0 %v357, 32
      %v1109 = vpop.permute.xlu0 %1108
      %1110 = vrot.lane.b32.xlu0 %v358, 32
      %v1111 = vpop.permute.xlu0 %1110
      %1112 = vrot.lane.b32.xlu0 %v359, 32
      %v1113 = vpop.permute.xlu0 %1112
      %1114 = vrot.lane.b32.xlu0 %v360, 32
      %v1115 = vpop.permute.xlu0 %1114
      %1116 = vrot.lane.b32.xlu0 %v361, 32
      %v1117 = vpop.permute.xlu0 %1116
      %1118 = vrot.lane.b32.xlu0 %v362, 32
      %v1119 = vpop.permute.xlu0 %1118
      %1120 = vrot.lane.b32.xlu0 %v363, 32
      %v1121 = vpop.permute.xlu0 %1120
      %1122 = vrot.lane.b32.xlu0 %v364, 32
      %v1123 = vpop.permute.xlu0 %1122
      %1124 = vrot.lane.b32.xlu0 %v365, 32
      %v1125 = vpop.permute.xlu0 %1124
      %1126 = vrot.lane.b32.xlu0 %v366, 32
      %v1127 = vpop.permute.xlu0 %1126
      %1160 = vrot.lane.b32.xlu0 %v367, 36
      %v1161 = vpop.permute.xlu0 %1160
      %1162 = vrot.lane.b32.xlu0 %v368, 36
      %v1163 = vpop.permute.xlu0 %1162
      %1164 = vrot.lane.b32.xlu0 %v369, 36
      %v1165 = vpop.permute.xlu0 %1164
      %1166 = vrot.lane.b32.xlu0 %v370, 36
      %v1167 = vpop.permute.xlu0 %1166
      %1168 = vrot.lane.b32.xlu0 %v371, 36
      %v1169 = vpop.permute.xlu0 %1168
      %1170 = vrot.lane.b32.xlu0 %v372, 36
      %v1171 = vpop.permute.xlu0 %1170
      %1172 = vrot.lane.b32.xlu0 %v373, 36
      %v1173 = vpop.permute.xlu0 %1172
      %1174 = vrot.lane.b32.xlu0 %v374, 36
      %v1175 = vpop.permute.xlu0 %1174
      %1176 = vrot.lane.b32.xlu0 %v375, 36
      %v1177 = vpop.permute.xlu0 %1176
      %1178 = vrot.lane.b32.xlu0 %v376, 36
      %v1179 = vpop.permute.xlu0 %1178
      %1180 = vrot.lane.b32.xlu0 %v377, 36
      %v1181 = vpop.permute.xlu0 %1180
      %1182 = vrot.lane.b32.xlu0 %v378, 36
      %v1183 = vpop.permute.xlu0 %1182
      %1184 = vrot.lane.b32.xlu0 %v379, 36
      %v1185 = vpop.permute.xlu0 %1184
      %1186 = vrot.lane.b32.xlu0 %v380, 36
      %v1187 = vpop.permute.xlu0 %1186
      %1188 = vrot.lane.b32.xlu0 %v381, 36
      %v1189 = vpop.permute.xlu0 %1188
      %1190 = vrot.lane.b32.xlu0 %v382, 36
      %v1191 = vpop.permute.xlu0 %1190
      %1224 = vrot.lane.b32.xlu0 %v386, 40
      %v1225 = vpop.permute.xlu0 %1224
      %1226 = vrot.lane.b32.xlu0 %v387, 40
      %v1227 = vpop.permute.xlu0 %1226
      %1228 = vrot.lane.b32.xlu0 %v388, 40
      %v1229 = vpop.permute.xlu0 %1228
      %1230 = vrot.lane.b32.xlu0 %v389, 40
      %v1231 = vpop.permute.xlu0 %1230
      %1232 = vrot.lane.b32.xlu0 %v390, 40
      %v1233 = vpop.permute.xlu0 %1232
      %1234 = vrot.lane.b32.xlu0 %v391, 40
      %v1235 = vpop.permute.xlu0 %1234
      %1236 = vrot.lane.b32.xlu0 %v392, 40
      %v1237 = vpop.permute.xlu0 %1236
      %1238 = vrot.lane.b32.xlu0 %v393, 40
      %v1239 = vpop.permute.xlu0 %1238
      %1240 = vrot.lane.b32.xlu0 %v394, 40
      %v1241 = vpop.permute.xlu0 %1240
      %1242 = vrot.lane.b32.xlu0 %v395, 40
      %v1243 = vpop.permute.xlu0 %1242
      %1244 = vrot.lane.b32.xlu0 %v396, 40
      %v1245 = vpop.permute.xlu0 %1244
      %1246 = vrot.lane.b32.xlu0 %v397, 40
      %v1247 = vpop.permute.xlu0 %1246
      %1248 = vrot.lane.b32.xlu0 %v398, 40
      %v1249 = vpop.permute.xlu0 %1248
      %1250 = vrot.lane.b32.xlu0 %v399, 40
      %v1251 = vpop.permute.xlu0 %1250
      %1252 = vrot.lane.b32.xlu0 %v400, 40
      %v1253 = vpop.permute.xlu0 %1252
      %1254 = vrot.lane.b32.xlu0 %v401, 40
      %v1255 = vpop.permute.xlu0 %1254
      %1288 = vrot.lane.b32.xlu0 %v402, 44
      %v1289 = vpop.permute.xlu0 %1288
      %1290 = vrot.lane.b32.xlu0 %v403, 44
      %v1291 = vpop.permute.xlu0 %1290
      %1292 = vrot.lane.b32.xlu0 %v404, 44
      %v1293 = vpop.permute.xlu0 %1292
      %1294 = vrot.lane.b32.xlu0 %v405, 44
      %v1295 = vpop.permute.xlu0 %1294
      %1296 = vrot.lane.b32.xlu0 %v406, 44
      %v1297 = vpop.permute.xlu0 %1296
      %1298 = vrot.lane.b32.xlu0 %v407, 44
      %v1299 = vpop.permute.xlu0 %1298
      %1300 = vrot.lane.b32.xlu0 %v408, 44
      %v1301 = vpop.permute.xlu0 %1300
      %1302 = vrot.lane.b32.xlu0 %v409, 44
      %v1303 = vpop.permute.xlu0 %1302
      %1304 = vrot.lane.b32.xlu0 %v410, 44
      %v1305 = vpop.permute.xlu0 %1304
      %1306 = vrot.lane.b32.xlu0 %v411, 44
      %v1307 = vpop.permute.xlu0 %1306
      %1308 = vrot.lane.b32.xlu0 %v412, 44
      %v1309 = vpop.permute.xlu0 %1308
      %1310 = vrot.lane.b32.xlu0 %v413, 44
      %v1311 = vpop.permute.xlu0 %1310
      %1312 = vrot.lane.b32.xlu0 %v414, 44
      %v1313 = vpop.permute.xlu0 %1312
      %1314 = vrot.lane.b32.xlu0 %v415, 44
      %v1315 = vpop.permute.xlu0 %1314
      %1316 = vrot.lane.b32.xlu0 %v416, 44
      %v1317 = vpop.permute.xlu0 %1316
      %1318 = vrot.lane.b32.xlu0 %v417, 44
      %v1319 = vpop.permute.xlu0 %1318
      %1352 = vrot.lane.b32.xlu0 %v418, 48
      %v1353 = vpop.permute.xlu0 %1352
      %1354 = vrot.lane.b32.xlu0 %v419, 48
      %v1355 = vpop.permute.xlu0 %1354
      %1356 = vrot.lane.b32.xlu0 %v420, 48
      %v1357 = vpop.permute.xlu0 %1356
      %1358 = vrot.lane.b32.xlu0 %v421, 48
      %v1359 = vpop.permute.xlu0 %1358
      %1360 = vrot.lane.b32.xlu0 %v422, 48
      %v1361 = vpop.permute.xlu0 %1360
      %1362 = vrot.lane.b32.xlu0 %v423, 48
      %v1363 = vpop.permute.xlu0 %1362
      %1364 = vrot.lane.b32.xlu0 %v424, 48
      %v1365 = vpop.permute.xlu0 %1364
      %1366 = vrot.lane.b32.xlu0 %v425, 48
      %v1367 = vpop.permute.xlu0 %1366
      %1368 = vrot.lane.b32.xlu0 %v426, 48
      %v1369 = vpop.permute.xlu0 %1368
      %1370 = vrot.lane.b32.xlu0 %v427, 48
      %v1371 = vpop.permute.xlu0 %1370
      %1372 = vrot.lane.b32.xlu0 %v428, 48
      %v1373 = vpop.permute.xlu0 %1372
      %1374 = vrot.lane.b32.xlu0 %v429, 48
      %v1375 = vpop.permute.xlu0 %1374
      %1376 = vrot.lane.b32.xlu0 %v430, 48
      %v1377 = vpop.permute.xlu0 %1376
      %1378 = vrot.lane.b32.xlu0 %v431, 48
      %v1379 = vpop.permute.xlu0 %1378
      %1380 = vrot.lane.b32.xlu0 %v432, 48
      %v1381 = vpop.permute.xlu0 %1380
      %1382 = vrot.lane.b32.xlu0 %v433, 48
      %v1383 = vpop.permute.xlu0 %1382
      %1416 = vrot.lane.b32.xlu0 %v434, 52
      %v1417 = vpop.permute.xlu0 %1416
      %1418 = vrot.lane.b32.xlu0 %v435, 52
      %v1419 = vpop.permute.xlu0 %1418
      %1420 = vrot.lane.b32.xlu0 %v436, 52
      %v1421 = vpop.permute.xlu0 %1420
      %1422 = vrot.lane.b32.xlu0 %v437, 52
      %v1423 = vpop.permute.xlu0 %1422
      %1424 = vrot.lane.b32.xlu0 %v438, 52
      %v1425 = vpop.permute.xlu0 %1424
      %1426 = vrot.lane.b32.xlu0 %v439, 52
      %v1427 = vpop.permute.xlu0 %1426
      %1428 = vrot.lane.b32.xlu0 %v440, 52
      %v1429 = vpop.permute.xlu0 %1428
      %1430 = vrot.lane.b32.xlu0 %v441, 52
      %v1431 = vpop.permute.xlu0 %1430
      %1432 = vrot.lane.b32.xlu0 %v442, 52
      %v1433 = vpop.permute.xlu0 %1432
      %1434 = vrot.lane.b32.xlu0 %v443, 52
      %v1435 = vpop.permute.xlu0 %1434
      %1436 = vrot.lane.b32.xlu0 %v444, 52
      %v1437 = vpop.permute.xlu0 %1436
      %1438 = vrot.lane.b32.xlu0 %v445, 52
      %v1439 = vpop.permute.xlu0 %1438
      %1440 = vrot.lane.b32.xlu0 %v446, 52
      %v1441 = vpop.permute.xlu0 %1440
      %1442 = vrot.lane.b32.xlu0 %v447, 52
      %v1443 = vpop.permute.xlu0 %1442
      %1444 = vrot.lane.b32.xlu0 %v448, 52
      %v1445 = vpop.permute.xlu0 %1444
      %1446 = vrot.lane.b32.xlu0 %v449, 52
      %v1447 = vpop.permute.xlu0 %1446
      %1480 = vrot.lane.b32.xlu0 %v450, 56
      %v1481 = vpop.permute.xlu0 %1480
      %1482 = vrot.lane.b32.xlu0 %v451, 56
      %v1483 = vpop.permute.xlu0 %1482
      %1484 = vrot.lane.b32.xlu0 %v452, 56
      %v1485 = vpop.permute.xlu0 %1484
      %1486 = vrot.lane.b32.xlu0 %v453, 56
      %v1487 = vpop.permute.xlu0 %1486
      %1488 = vrot.lane.b32.xlu0 %v454, 56
      %v1489 = vpop.permute.xlu0 %1488
      %1490 = vrot.lane.b32.xlu0 %v455, 56
      %v1491 = vpop.permute.xlu0 %1490
      %1492 = vrot.lane.b32.xlu0 %v456, 56
      %v1493 = vpop.permute.xlu0 %1492
      %1494 = vrot.lane.b32.xlu0 %v457, 56
      %v1495 = vpop.permute.xlu0 %1494
      %1496 = vrot.lane.b32.xlu0 %v458, 56
      %v1497 = vpop.permute.xlu0 %1496
      %1498 = vrot.lane.b32.xlu0 %v459, 56
      %v1499 = vpop.permute.xlu0 %1498
      %1500 = vrot.lane.b32.xlu0 %v460, 56
      %v1501 = vpop.permute.xlu0 %1500
      %1502 = vrot.lane.b32.xlu0 %v461, 56
      %v1503 = vpop.permute.xlu0 %1502
      %1504 = vrot.lane.b32.xlu0 %v462, 56
      %v1505 = vpop.permute.xlu0 %1504
      %1506 = vrot.lane.b32.xlu0 %v463, 56
      %v1507 = vpop.permute.xlu0 %1506
      %1508 = vrot.lane.b32.xlu0 %v464, 56
      %v1509 = vpop.permute.xlu0 %1508
      %1510 = vrot.lane.b32.xlu0 %v465, 56
      %v1511 = vpop.permute.xlu0 %1510
      %1544 = vrot.lane.b32.xlu0 %v469, 60
      %v1545 = vpop.permute.xlu0 %1544
      %1546 = vrot.lane.b32.xlu0 %v470, 60
      %v1547 = vpop.permute.xlu0 %1546
      %1548 = vrot.lane.b32.xlu0 %v471, 60
      %v1549 = vpop.permute.xlu0 %1548
      %1550 = vrot.lane.b32.xlu0 %v472, 60
      %v1551 = vpop.permute.xlu0 %1550
      %1552 = vrot.lane.b32.xlu0 %v473, 60
      %v1553 = vpop.permute.xlu0 %1552
      %1554 = vrot.lane.b32.xlu0 %v474, 60
      %v1555 = vpop.permute.xlu0 %1554
      %1556 = vrot.lane.b32.xlu0 %v475, 60
      %v1557 = vpop.permute.xlu0 %1556
      %1558 = vrot.lane.b32.xlu0 %v476, 60
      %v1559 = vpop.permute.xlu0 %1558
      %1560 = vrot.lane.b32.xlu0 %v477, 60
      %v1561 = vpop.permute.xlu0 %1560
      %1562 = vrot.lane.b32.xlu0 %v478, 60
      %v1563 = vpop.permute.xlu0 %1562
      %1564 = vrot.lane.b32.xlu0 %v479, 60
      %v1565 = vpop.permute.xlu0 %1564
      %1566 = vrot.lane.b32.xlu0 %v480, 60
      %v1567 = vpop.permute.xlu0 %1566
      %1568 = vrot.lane.b32.xlu0 %v481, 60
      %v1569 = vpop.permute.xlu0 %1568
      %1570 = vrot.lane.b32.xlu0 %v482, 60
      %v1571 = vpop.permute.xlu0 %1570
      %1572 = vrot.lane.b32.xlu0 %v483, 60
      %v1573 = vpop.permute.xlu0 %1572
      %1574 = vrot.lane.b32.xlu0 %v484, 60
      %v1575 = vpop.permute.xlu0 %1574
      %vm1592 = vcmask 31744
      %v1593 = vsel %vm1592, %v220, %v649
      %v1594 = vsel %vm1592, %v221, %v651
      %v1595 = vsel %vm1592, %v222, %v653
      %v1596 = vsel %vm1592, %v223, %v655
      %v1597 = vsel %vm1592, %v224, %v657
      %v1598 = vsel %vm1592, %v225, %v659
      %v1599 = vsel %vm1592, %v226, %v661
      %v1600 = vsel %vm1592, %v227, %v663
      %v1601 = vsel %vm1592, %v228, %v665
      %v1602 = vsel %vm1592, %v229, %v667
      %v1603 = vsel %vm1592, %v230, %v669
      %v1604 = vsel %vm1592, %v231, %v671
      %v1605 = vsel %vm1592, %v232, %v673
      %v1606 = vsel %vm1592, %v233, %v675
      %v1607 = vsel %vm1592, %v234, %v677
      %v1608 = vsel %vm1592, %v235, %v679
      %vm1609 = vcmask 64512
      %v1610 = vsel %vm1609, %v1593, %v713
      %v1611 = vsel %vm1609, %v1594, %v715
      %v1612 = vsel %vm1609, %v1595, %v717
      %v1613 = vsel %vm1609, %v1596, %v719
      %v1614 = vsel %vm1609, %v1597, %v721
      %v1615 = vsel %vm1609, %v1598, %v723
      %v1616 = vsel %vm1609, %v1599, %v725
      %v1617 = vsel %vm1609, %v1600, %v727
      %v1618 = vsel %vm1609, %v1601, %v729
      %v1619 = vsel %vm1609, %v1602, %v731
      %v1620 = vsel %vm1609, %v1603, %v733
      %v1621 = vsel %vm1609, %v1604, %v735
      %v1622 = vsel %vm1609, %v1605, %v737
      %v1623 = vsel %vm1609, %v1606, %v739
      %v1624 = vsel %vm1609, %v1607, %v741
      %v1625 = vsel %vm1609, %v1608, %v743
      %vm1626 = vcmask 97280
      %v1627 = vsel %vm1626, %v1610, %v777
      %v1628 = vsel %vm1626, %v1611, %v779
      %v1629 = vsel %vm1626, %v1612, %v781
      %v1630 = vsel %vm1626, %v1613, %v783
      %v1631 = vsel %vm1626, %v1614, %v785
      %v1632 = vsel %vm1626, %v1615, %v787
      %v1633 = vsel %vm1626, %v1616, %v789
      %v1634 = vsel %vm1626, %v1617, %v791
      %v1635 = vsel %vm1626, %v1618, %v793
      %v1636 = vsel %vm1626, %v1619, %v795
      %v1637 = vsel %vm1626, %v1620, %v797
      %v1638 = vsel %vm1626, %v1621, %v799
      %v1639 = vsel %vm1626, %v1622, %v801
      %v1640 = vsel %vm1626, %v1623, %v803
      %v1641 = vsel %vm1626, %v1624, %v805
      %v1642 = vsel %vm1626, %v1625, %v807
      %vm1643 = vcmask 130048
      %v1644 = vsel %vm1643, %v1627, %v841
      %v1645 = vsel %vm1643, %v1628, %v843
      %v1646 = vsel %vm1643, %v1629, %v845
      %v1647 = vsel %vm1643, %v1630, %v847
      %v1648 = vsel %vm1643, %v1631, %v849
      %v1649 = vsel %vm1643, %v1632, %v851
      %v1650 = vsel %vm1643, %v1633, %v853
      %v1651 = vsel %vm1643, %v1634, %v855
      %v1652 = vsel %vm1643, %v1635, %v857
      %v1653 = vsel %vm1643, %v1636, %v859
      %v1654 = vsel %vm1643, %v1637, %v861
      %v1655 = vsel %vm1643, %v1638, %v863
      %v1656 = vsel %vm1643, %v1639, %v865
      %v1657 = vsel %vm1643, %v1640, %v867
      %v1658 = vsel %vm1643, %v1641, %v869
      %v1659 = vsel %vm1643, %v1642, %v871
      %vm1660 = vcmask 162816
      %v1661 = vsel %vm1660, %v1644, %v905
      %v1662 = vsel %vm1660, %v1645, %v907
      %v1663 = vsel %vm1660, %v1646, %v909
      %v1664 = vsel %vm1660, %v1647, %v911
      %v1665 = vsel %vm1660, %v1648, %v913
      %v1666 = vsel %vm1660, %v1649, %v915
      %v1667 = vsel %vm1660, %v1650, %v917
      %v1668 = vsel %vm1660, %v1651, %v919
      %v1669 = vsel %vm1660, %v1652, %v921
      %v1670 = vsel %vm1660, %v1653, %v923
      %v1671 = vsel %vm1660, %v1654, %v925
      %v1672 = vsel %vm1660, %v1655, %v927
      %v1673 = vsel %vm1660, %v1656, %v929
      %v1674 = vsel %vm1660, %v1657, %v931
      %v1675 = vsel %vm1660, %v1658, %v933
      %v1676 = vsel %vm1660, %v1659, %v935
      %vm1677 = vcmask 195584
      %v1678 = vsel %vm1677, %v1661, %v969
      %v1679 = vsel %vm1677, %v1662, %v971
      %v1680 = vsel %vm1677, %v1663, %v973
      %v1681 = vsel %vm1677, %v1664, %v975
      %v1682 = vsel %vm1677, %v1665, %v977
      %v1683 = vsel %vm1677, %v1666, %v979
      %v1684 = vsel %vm1677, %v1667, %v981
      %v1685 = vsel %vm1677, %v1668, %v983
      %v1686 = vsel %vm1677, %v1669, %v985
      %v1687 = vsel %vm1677, %v1670, %v987
      %v1688 = vsel %vm1677, %v1671, %v989
      %v1689 = vsel %vm1677, %v1672, %v991
      %v1690 = vsel %vm1677, %v1673, %v993
      %v1691 = vsel %vm1677, %v1674, %v995
      %v1692 = vsel %vm1677, %v1675, %v997
      %v1693 = vsel %vm1677, %v1676, %v999
      %vm1694 = vcmask 228352
      %v1695 = vsel %vm1694, %v1678, %v1033
      %v1696 = vsel %vm1694, %v1679, %v1035
      %v1697 = vsel %vm1694, %v1680, %v1037
      %v1698 = vsel %vm1694, %v1681, %v1039
      %v1699 = vsel %vm1694, %v1682, %v1041
      %v1700 = vsel %vm1694, %v1683, %v1043
      %v1701 = vsel %vm1694, %v1684, %v1045
      %v1702 = vsel %vm1694, %v1685, %v1047
      %v1703 = vsel %vm1694, %v1686, %v1049
      %v1704 = vsel %vm1694, %v1687, %v1051
      %v1705 = vsel %vm1694, %v1688, %v1053
      %v1706 = vsel %vm1694, %v1689, %v1055
      %v1707 = vsel %vm1694, %v1690, %v1057
      %v1708 = vsel %vm1694, %v1691, %v1059
      %v1709 = vsel %vm1694, %v1692, %v1061
      %v1710 = vsel %vm1694, %v1693, %v1063
      %vm1711 = vcmask 261120
      %v1712 = vsel %vm1711, %v1695, %v1097
      %v1713 = vsel %vm1711, %v1696, %v1099
      %v1714 = vsel %vm1711, %v1697, %v1101
      %v1715 = vsel %vm1711, %v1698, %v1103
      %v1716 = vsel %vm1711, %v1699, %v1105
      %v1717 = vsel %vm1711, %v1700, %v1107
      %v1718 = vsel %vm1711, %v1701, %v1109
      %v1719 = vsel %vm1711, %v1702, %v1111
      %v1720 = vsel %vm1711, %v1703, %v1113
      %v1721 = vsel %vm1711, %v1704, %v1115
      %v1722 = vsel %vm1711, %v1705, %v1117
      %v1723 = vsel %vm1711, %v1706, %v1119
      %v1724 = vsel %vm1711, %v1707, %v1121
      %v1725 = vsel %vm1711, %v1708, %v1123
      %v1726 = vsel %vm1711, %v1709, %v1125
      %v1727 = vsel %vm1711, %v1710, %v1127
      %vm1728 = vcmask 293888
      %v1729 = vsel %vm1728, %v1712, %v1161
      %v1730 = vsel %vm1728, %v1713, %v1163
      %v1731 = vsel %vm1728, %v1714, %v1165
      %v1732 = vsel %vm1728, %v1715, %v1167
      %v1733 = vsel %vm1728, %v1716, %v1169
      %v1734 = vsel %vm1728, %v1717, %v1171
      %v1735 = vsel %vm1728, %v1718, %v1173
      %v1736 = vsel %vm1728, %v1719, %v1175
      %v1737 = vsel %vm1728, %v1720, %v1177
      %v1738 = vsel %vm1728, %v1721, %v1179
      %v1739 = vsel %vm1728, %v1722, %v1181
      %v1740 = vsel %vm1728, %v1723, %v1183
      %v1741 = vsel %vm1728, %v1724, %v1185
      %v1742 = vsel %vm1728, %v1725, %v1187
      %v1743 = vsel %vm1728, %v1726, %v1189
      %v1744 = vsel %vm1728, %v1727, %v1191
      %vm1745 = vcmask 326656
      %v1746 = vsel %vm1745, %v1729, %v1225
      %v1747 = vsel %vm1745, %v1730, %v1227
      %v1748 = vsel %vm1745, %v1731, %v1229
      %v1749 = vsel %vm1745, %v1732, %v1231
      %v1750 = vsel %vm1745, %v1733, %v1233
      %v1751 = vsel %vm1745, %v1734, %v1235
      %v1752 = vsel %vm1745, %v1735, %v1237
      %v1753 = vsel %vm1745, %v1736, %v1239
      %v1754 = vsel %vm1745, %v1737, %v1241
      %v1755 = vsel %vm1745, %v1738, %v1243
      %v1756 = vsel %vm1745, %v1739, %v1245
      %v1757 = vsel %vm1745, %v1740, %v1247
      %v1758 = vsel %vm1745, %v1741, %v1249
      %v1759 = vsel %vm1745, %v1742, %v1251
      %v1760 = vsel %vm1745, %v1743, %v1253
      %v1761 = vsel %vm1745, %v1744, %v1255
      %vm1762 = vcmask 359424
      %v1763 = vsel %vm1762, %v1746, %v1289
      %v1764 = vsel %vm1762, %v1747, %v1291
      %v1765 = vsel %vm1762, %v1748, %v1293
      %v1766 = vsel %vm1762, %v1749, %v1295
      %v1767 = vsel %vm1762, %v1750, %v1297
      %v1768 = vsel %vm1762, %v1751, %v1299
      %v1769 = vsel %vm1762, %v1752, %v1301
      %v1770 = vsel %vm1762, %v1753, %v1303
      %v1771 = vsel %vm1762, %v1754, %v1305
      %v1772 = vsel %vm1762, %v1755, %v1307
      %v1773 = vsel %vm1762, %v1756, %v1309
      %v1774 = vsel %vm1762, %v1757, %v1311
      %v1775 = vsel %vm1762, %v1758, %v1313
      %v1776 = vsel %vm1762, %v1759, %v1315
      %v1777 = vsel %vm1762, %v1760, %v1317
      %v1778 = vsel %vm1762, %v1761, %v1319
      %vm1779 = vcmask 392192
      %v1780 = vsel %vm1779, %v1763, %v1353
      %v1781 = vsel %vm1779, %v1764, %v1355
      %v1782 = vsel %vm1779, %v1765, %v1357
      %v1783 = vsel %vm1779, %v1766, %v1359
      %v1784 = vsel %vm1779, %v1767, %v1361
      %v1785 = vsel %vm1779, %v1768, %v1363
      %v1786 = vsel %vm1779, %v1769, %v1365
      %v1787 = vsel %vm1779, %v1770, %v1367
      %v1788 = vsel %vm1779, %v1771, %v1369
      %v1789 = vsel %vm1779, %v1772, %v1371
      %v1790 = vsel %vm1779, %v1773, %v1373
      %v1791 = vsel %vm1779, %v1774, %v1375
      %v1792 = vsel %vm1779, %v1775, %v1377
      %v1793 = vsel %vm1779, %v1776, %v1379
      %v1794 = vsel %vm1779, %v1777, %v1381
      %v1795 = vsel %vm1779, %v1778, %v1383
      %vm1796 = vcmask 424960
      %v1797 = vsel %vm1796, %v1780, %v1417
      %v1798 = vsel %vm1796, %v1781, %v1419
      %v1799 = vsel %vm1796, %v1782, %v1421
      %v1800 = vsel %vm1796, %v1783, %v1423
      %v1801 = vsel %vm1796, %v1784, %v1425
      %v1802 = vsel %vm1796, %v1785, %v1427
      %v1803 = vsel %vm1796, %v1786, %v1429
      %v1804 = vsel %vm1796, %v1787, %v1431
      %v1805 = vsel %vm1796, %v1788, %v1433
      %v1806 = vsel %vm1796, %v1789, %v1435
      %v1807 = vsel %vm1796, %v1790, %v1437
      %v1808 = vsel %vm1796, %v1791, %v1439
      %v1809 = vsel %vm1796, %v1792, %v1441
      %v1810 = vsel %vm1796, %v1793, %v1443
      %v1811 = vsel %vm1796, %v1794, %v1445
      %v1812 = vsel %vm1796, %v1795, %v1447
      %vm1813 = vcmask 457728
      %v1814 = vsel %vm1813, %v1797, %v1481
      %v1815 = vsel %vm1813, %v1798, %v1483
      %v1816 = vsel %vm1813, %v1799, %v1485
      %v1817 = vsel %vm1813, %v1800, %v1487
      %v1818 = vsel %vm1813, %v1801, %v1489
      %v1819 = vsel %vm1813, %v1802, %v1491
      %v1820 = vsel %vm1813, %v1803, %v1493
      %v1821 = vsel %vm1813, %v1804, %v1495
      %v1822 = vsel %vm1813, %v1805, %v1497
      %v1823 = vsel %vm1813, %v1806, %v1499
      %v1824 = vsel %vm1813, %v1807, %v1501
      %v1825 = vsel %vm1813, %v1808, %v1503
      %v1826 = vsel %vm1813, %v1809, %v1505
      %v1827 = vsel %vm1813, %v1810, %v1507
      %v1828 = vsel %vm1813, %v1811, %v1509
      %v1829 = vsel %vm1813, %v1812, %v1511
      %vm1830 = vcmask 490496
      %v1831 = vsel %vm1830, %v1814, %v1545
      %v1832 = vsel %vm1830, %v1815, %v1547
      %v1833 = vsel %vm1830, %v1816, %v1549
      %v1834 = vsel %vm1830, %v1817, %v1551
      %v1835 = vsel %vm1830, %v1818, %v1553
      %v1836 = vsel %vm1830, %v1819, %v1555
      %v1837 = vsel %vm1830, %v1820, %v1557
      %v1838 = vsel %vm1830, %v1821, %v1559
      %v1839 = vsel %vm1830, %v1822, %v1561
      %v1840 = vsel %vm1830, %v1823, %v1563
      %v1841 = vsel %vm1830, %v1824, %v1565
      %v1842 = vsel %vm1830, %v1825, %v1567
      %v1843 = vsel %vm1830, %v1826, %v1569
      %v1844 = vsel %vm1830, %v1827, %v1571
      %v1845 = vsel %vm1830, %v1828, %v1573
      %v1846 = vsel %vm1830, %v1829, %v1575
      %1863 = vrot.lane.b32.xlu0 %v501, 4
      %v1864 = vpop.permute.xlu0 %1863
      %1865 = vrot.lane.b32.xlu0 %v502, 4
      %v1866 = vpop.permute.xlu0 %1865
      %1867 = vrot.lane.b32.xlu0 %v503, 4
      %v1868 = vpop.permute.xlu0 %1867
      %1869 = vrot.lane.b32.xlu0 %v504, 4
      %v1870 = vpop.permute.xlu0 %1869
      %1871 = vrot.lane.b32.xlu0 %v505, 4
      %v1872 = vpop.permute.xlu0 %1871
      %1873 = vrot.lane.b32.xlu0 %v506, 4
      %v1874 = vpop.permute.xlu0 %1873
      %1875 = vrot.lane.b32.xlu0 %v507, 4
      %v1876 = vpop.permute.xlu0 %1875
      %1877 = vrot.lane.b32.xlu0 %v508, 4
      %v1878 = vpop.permute.xlu0 %1877
      %1879 = vrot.lane.b32.xlu0 %v509, 4
      %v1880 = vpop.permute.xlu0 %1879
      %1881 = vrot.lane.b32.xlu0 %v510, 4
      %v1882 = vpop.permute.xlu0 %1881
      %1883 = vrot.lane.b32.xlu0 %v511, 4
      %v1884 = vpop.permute.xlu0 %1883
      %1885 = vrot.lane.b32.xlu0 %v512, 4
      %v1886 = vpop.permute.xlu0 %1885
      %1887 = vrot.lane.b32.xlu0 %v513, 4
      %v1888 = vpop.permute.xlu0 %1887
      %1889 = vrot.lane.b32.xlu0 %v514, 4
      %v1890 = vpop.permute.xlu0 %1889
      %1891 = vrot.lane.b32.xlu0 %v515, 4
      %v1892 = vpop.permute.xlu0 %1891
      %1893 = vrot.lane.b32.xlu0 %v516, 4
      %v1894 = vpop.permute.xlu0 %1893
      %1927 = vrot.lane.b32.xlu0 %v517, 8
      %v1928 = vpop.permute.xlu0 %1927
      %1929 = vrot.lane.b32.xlu0 %v518, 8
      %v1930 = vpop.permute.xlu0 %1929
      %1931 = vrot.lane.b32.xlu0 %v519, 8
      %v1932 = vpop.permute.xlu0 %1931
      %1933 = vrot.lane.b32.xlu0 %v520, 8
      %v1934 = vpop.permute.xlu0 %1933
      %1935 = vrot.lane.b32.xlu0 %v521, 8
      %v1936 = vpop.permute.xlu0 %1935
      %1937 = vrot.lane.b32.xlu0 %v522, 8
      %v1938 = vpop.permute.xlu0 %1937
      %1939 = vrot.lane.b32.xlu0 %v523, 8
      %v1940 = vpop.permute.xlu0 %1939
      %1941 = vrot.lane.b32.xlu0 %v524, 8
      %v1942 = vpop.permute.xlu0 %1941
      %1943 = vrot.lane.b32.xlu0 %v525, 8
      %v1944 = vpop.permute.xlu0 %1943
      %1945 = vrot.lane.b32.xlu0 %v526, 8
      %v1946 = vpop.permute.xlu0 %1945
      %1947 = vrot.lane.b32.xlu0 %v527, 8
      %v1948 = vpop.permute.xlu0 %1947
      %1949 = vrot.lane.b32.xlu0 %v528, 8
      %v1950 = vpop.permute.xlu0 %1949
      %1951 = vrot.lane.b32.xlu0 %v529, 8
      %v1952 = vpop.permute.xlu0 %1951
      %1953 = vrot.lane.b32.xlu0 %v530, 8
      %v1954 = vpop.permute.xlu0 %1953
      %1955 = vrot.lane.b32.xlu0 %v531, 8
      %v1956 = vpop.permute.xlu0 %1955
      %1957 = vrot.lane.b32.xlu0 %v532, 8
      %v1958 = vpop.permute.xlu0 %1957
      %1991 = vrot.lane.b32.xlu0 %v533, 12
      %v1992 = vpop.permute.xlu0 %1991
      %1993 = vrot.lane.b32.xlu0 %v534, 12
      %v1994 = vpop.permute.xlu0 %1993
      %1995 = vrot.lane.b32.xlu0 %v535, 12
      %v1996 = vpop.permute.xlu0 %1995
      %1997 = vrot.lane.b32.xlu0 %v536, 12
      %v1998 = vpop.permute.xlu0 %1997
      %1999 = vrot.lane.b32.xlu0 %v537, 12
      %v2000 = vpop.permute.xlu0 %1999
      %2001 = vrot.lane.b32.xlu0 %v538, 12
      %v2002 = vpop.permute.xlu0 %2001
      %2003 = vrot.lane.b32.xlu0 %v539, 12
      %v2004 = vpop.permute.xlu0 %2003
      %2005 = vrot.lane.b32.xlu0 %v540, 12
      %v2006 = vpop.permute.xlu0 %2005
      %2007 = vrot.lane.b32.xlu0 %v541, 12
      %v2008 = vpop.permute.xlu0 %2007
      %2009 = vrot.lane.b32.xlu0 %v542, 12
      %v2010 = vpop.permute.xlu0 %2009
      %2011 = vrot.lane.b32.xlu0 %v543, 12
      %v2012 = vpop.permute.xlu0 %2011
      %2013 = vrot.lane.b32.xlu0 %v544, 12
      %v2014 = vpop.permute.xlu0 %2013
      %2015 = vrot.lane.b32.xlu0 %v545, 12
      %v2016 = vpop.permute.xlu0 %2015
      %2017 = vrot.lane.b32.xlu0 %v546, 12
      %v2018 = vpop.permute.xlu0 %2017
      %2019 = vrot.lane.b32.xlu0 %v547, 12
      %v2020 = vpop.permute.xlu0 %2019
      %2021 = vrot.lane.b32.xlu0 %v548, 12
      %v2022 = vpop.permute.xlu0 %2021
      %2055 = vrot.lane.b32.xlu0 %v552, 16
      %v2056 = vpop.permute.xlu0 %2055
      %2057 = vrot.lane.b32.xlu0 %v553, 16
      %v2058 = vpop.permute.xlu0 %2057
      %2059 = vrot.lane.b32.xlu0 %v554, 16
      %v2060 = vpop.permute.xlu0 %2059
      %2061 = vrot.lane.b32.xlu0 %v555, 16
      %v2062 = vpop.permute.xlu0 %2061
      %2063 = vrot.lane.b32.xlu0 %v556, 16
      %v2064 = vpop.permute.xlu0 %2063
      %2065 = vrot.lane.b32.xlu0 %v557, 16
      %v2066 = vpop.permute.xlu0 %2065
      %2067 = vrot.lane.b32.xlu0 %v558, 16
      %v2068 = vpop.permute.xlu0 %2067
      %2069 = vrot.lane.b32.xlu0 %v559, 16
      %v2070 = vpop.permute.xlu0 %2069
      %2071 = vrot.lane.b32.xlu0 %v560, 16
      %v2072 = vpop.permute.xlu0 %2071
      %2073 = vrot.lane.b32.xlu0 %v561, 16
      %v2074 = vpop.permute.xlu0 %2073
      %2075 = vrot.lane.b32.xlu0 %v562, 16
      %v2076 = vpop.permute.xlu0 %2075
      %2077 = vrot.lane.b32.xlu0 %v563, 16
      %v2078 = vpop.permute.xlu0 %2077
      %2079 = vrot.lane.b32.xlu0 %v564, 16
      %v2080 = vpop.permute.xlu0 %2079
      %2081 = vrot.lane.b32.xlu0 %v565, 16
      %v2082 = vpop.permute.xlu0 %2081
      %2083 = vrot.lane.b32.xlu0 %v566, 16
      %v2084 = vpop.permute.xlu0 %2083
      %2085 = vrot.lane.b32.xlu0 %v567, 16
      %v2086 = vpop.permute.xlu0 %2085
      %2119 = vrot.lane.b32.xlu0 %v568, 20
      %v2120 = vpop.permute.xlu0 %2119
      %2121 = vrot.lane.b32.xlu0 %v569, 20
      %v2122 = vpop.permute.xlu0 %2121
      %2123 = vrot.lane.b32.xlu0 %v570, 20
      %v2124 = vpop.permute.xlu0 %2123
      %2125 = vrot.lane.b32.xlu0 %v571, 20
      %v2126 = vpop.permute.xlu0 %2125
      %2127 = vrot.lane.b32.xlu0 %v572, 20
      %v2128 = vpop.permute.xlu0 %2127
      %2129 = vrot.lane.b32.xlu0 %v573, 20
      %v2130 = vpop.permute.xlu0 %2129
      %2131 = vrot.lane.b32.xlu0 %v574, 20
      %v2132 = vpop.permute.xlu0 %2131
      %2133 = vrot.lane.b32.xlu0 %v575, 20
      %v2134 = vpop.permute.xlu0 %2133
      %2135 = vrot.lane.b32.xlu0 %v576, 20
      %v2136 = vpop.permute.xlu0 %2135
      %2137 = vrot.lane.b32.xlu0 %v577, 20
      %v2138 = vpop.permute.xlu0 %2137
      %2139 = vrot.lane.b32.xlu0 %v578, 20
      %v2140 = vpop.permute.xlu0 %2139
      %2141 = vrot.lane.b32.xlu0 %v579, 20
      %v2142 = vpop.permute.xlu0 %2141
      %2143 = vrot.lane.b32.xlu0 %v580, 20
      %v2144 = vpop.permute.xlu0 %2143
      %2145 = vrot.lane.b32.xlu0 %v581, 20
      %v2146 = vpop.permute.xlu0 %2145
      %2147 = vrot.lane.b32.xlu0 %v582, 20
      %v2148 = vpop.permute.xlu0 %2147
      %2149 = vrot.lane.b32.xlu0 %v583, 20
      %v2150 = vpop.permute.xlu0 %2149
      %2183 = vrot.lane.b32.xlu0 %v584, 24
      %v2184 = vpop.permute.xlu0 %2183
      %2185 = vrot.lane.b32.xlu0 %v585, 24
      %v2186 = vpop.permute.xlu0 %2185
      %2187 = vrot.lane.b32.xlu0 %v586, 24
      %v2188 = vpop.permute.xlu0 %2187
      %2189 = vrot.lane.b32.xlu0 %v587, 24
      %v2190 = vpop.permute.xlu0 %2189
      %2191 = vrot.lane.b32.xlu0 %v588, 24
      %v2192 = vpop.permute.xlu0 %2191
      %2193 = vrot.lane.b32.xlu0 %v589, 24
      %v2194 = vpop.permute.xlu0 %2193
      %2195 = vrot.lane.b32.xlu0 %v590, 24
      %v2196 = vpop.permute.xlu0 %2195
      %2197 = vrot.lane.b32.xlu0 %v591, 24
      %v2198 = vpop.permute.xlu0 %2197
      %2199 = vrot.lane.b32.xlu0 %v592, 24
      %v2200 = vpop.permute.xlu0 %2199
      %2201 = vrot.lane.b32.xlu0 %v593, 24
      %v2202 = vpop.permute.xlu0 %2201
      %2203 = vrot.lane.b32.xlu0 %v594, 24
      %v2204 = vpop.permute.xlu0 %2203
      %2205 = vrot.lane.b32.xlu0 %v595, 24
      %v2206 = vpop.permute.xlu0 %2205
      %2207 = vrot.lane.b32.xlu0 %v596, 24
      %v2208 = vpop.permute.xlu0 %2207
      %2209 = vrot.lane.b32.xlu0 %v597, 24
      %v2210 = vpop.permute.xlu0 %2209
      %2211 = vrot.lane.b32.xlu0 %v598, 24
      %v2212 = vpop.permute.xlu0 %2211
      %2213 = vrot.lane.b32.xlu0 %v599, 24
      %v2214 = vpop.permute.xlu0 %2213
      %2247 = vrot.lane.b32.xlu0 %v600, 28
      %v2248 = vpop.permute.xlu0 %2247
      %2249 = vrot.lane.b32.xlu0 %v601, 28
      %v2250 = vpop.permute.xlu0 %2249
      %2251 = vrot.lane.b32.xlu0 %v602, 28
      %v2252 = vpop.permute.xlu0 %2251
      %2253 = vrot.lane.b32.xlu0 %v603, 28
      %v2254 = vpop.permute.xlu0 %2253
      %2255 = vrot.lane.b32.xlu0 %v604, 28
      %v2256 = vpop.permute.xlu0 %2255
      %2257 = vrot.lane.b32.xlu0 %v605, 28
      %v2258 = vpop.permute.xlu0 %2257
      %2259 = vrot.lane.b32.xlu0 %v606, 28
      %v2260 = vpop.permute.xlu0 %2259
      %2261 = vrot.lane.b32.xlu0 %v607, 28
      %v2262 = vpop.permute.xlu0 %2261
      %2263 = vrot.lane.b32.xlu0 %v608, 28
      %v2264 = vpop.permute.xlu0 %2263
      %2265 = vrot.lane.b32.xlu0 %v609, 28
      %v2266 = vpop.permute.xlu0 %2265
      %2267 = vrot.lane.b32.xlu0 %v610, 28
      %v2268 = vpop.permute.xlu0 %2267
      %2269 = vrot.lane.b32.xlu0 %v611, 28
      %v2270 = vpop.permute.xlu0 %2269
      %2271 = vrot.lane.b32.xlu0 %v612, 28
      %v2272 = vpop.permute.xlu0 %2271
      %2273 = vrot.lane.b32.xlu0 %v613, 28
      %v2274 = vpop.permute.xlu0 %2273
      %2275 = vrot.lane.b32.xlu0 %v614, 28
      %v2276 = vpop.permute.xlu0 %2275
      %2277 = vrot.lane.b32.xlu0 %v615, 28
      %v2278 = vpop.permute.xlu0 %2277
      %2311 = vrot.lane.b32.xlu0 %v616, 32
      %v2312 = vpop.permute.xlu0 %2311
      %2313 = vrot.lane.b32.xlu0 %v617, 32
      %v2314 = vpop.permute.xlu0 %2313
      %2315 = vrot.lane.b32.xlu0 %v618, 32
      %v2316 = vpop.permute.xlu0 %2315
      %2317 = vrot.lane.b32.xlu0 %v619, 32
      %v2318 = vpop.permute.xlu0 %2317
      %2319 = vrot.lane.b32.xlu0 %v620, 32
      %v2320 = vpop.permute.xlu0 %2319
      %2321 = vrot.lane.b32.xlu0 %v621, 32
      %v2322 = vpop.permute.xlu0 %2321
      %2323 = vrot.lane.b32.xlu0 %v622, 32
      %v2324 = vpop.permute.xlu0 %2323
      %2325 = vrot.lane.b32.xlu0 %v623, 32
      %v2326 = vpop.permute.xlu0 %2325
      %2327 = vrot.lane.b32.xlu0 %v624, 32
      %v2328 = vpop.permute.xlu0 %2327
      %2329 = vrot.lane.b32.xlu0 %v625, 32
      %v2330 = vpop.permute.xlu0 %2329
      %2331 = vrot.lane.b32.xlu0 %v626, 32
      %v2332 = vpop.permute.xlu0 %2331
      %2333 = vrot.lane.b32.xlu0 %v627, 32
      %v2334 = vpop.permute.xlu0 %2333
      %2335 = vrot.lane.b32.xlu0 %v628, 32
      %v2336 = vpop.permute.xlu0 %2335
      %2337 = vrot.lane.b32.xlu0 %v629, 32
      %v2338 = vpop.permute.xlu0 %2337
      %2339 = vrot.lane.b32.xlu0 %v630, 32
      %v2340 = vpop.permute.xlu0 %2339
      %2341 = vrot.lane.b32.xlu0 %v631, 32
      %v2342 = vpop.permute.xlu0 %2341
      %v2359 = vsel %vm1592, %v485, %v1864
      %v2360 = vsel %vm1592, %v486, %v1866
      %v2361 = vsel %vm1592, %v487, %v1868
      %v2362 = vsel %vm1592, %v488, %v1870
      %v2363 = vsel %vm1592, %v489, %v1872
      %v2364 = vsel %vm1592, %v490, %v1874
      %v2365 = vsel %vm1592, %v491, %v1876
      %v2366 = vsel %vm1592, %v492, %v1878
      %v2367 = vsel %vm1592, %v493, %v1880
      %v2368 = vsel %vm1592, %v494, %v1882
      %v2369 = vsel %vm1592, %v495, %v1884
      %v2370 = vsel %vm1592, %v496, %v1886
      %v2371 = vsel %vm1592, %v497, %v1888
      %v2372 = vsel %vm1592, %v498, %v1890
      %v2373 = vsel %vm1592, %v499, %v1892
      %v2374 = vsel %vm1592, %v500, %v1894
      %v2375 = vsel %vm1609, %v2359, %v1928
      %v2376 = vsel %vm1609, %v2360, %v1930
      %v2377 = vsel %vm1609, %v2361, %v1932
      %v2378 = vsel %vm1609, %v2362, %v1934
      %v2379 = vsel %vm1609, %v2363, %v1936
      %v2380 = vsel %vm1609, %v2364, %v1938
      %v2381 = vsel %vm1609, %v2365, %v1940
      %v2382 = vsel %vm1609, %v2366, %v1942
      %v2383 = vsel %vm1609, %v2367, %v1944
      %v2384 = vsel %vm1609, %v2368, %v1946
      %v2385 = vsel %vm1609, %v2369, %v1948
      %v2386 = vsel %vm1609, %v2370, %v1950
      %v2387 = vsel %vm1609, %v2371, %v1952
      %v2388 = vsel %vm1609, %v2372, %v1954
      %v2389 = vsel %vm1609, %v2373, %v1956
      %v2390 = vsel %vm1609, %v2374, %v1958
      %v2391 = vsel %vm1626, %v2375, %v1992
      %v2392 = vsel %vm1626, %v2376, %v1994
      %v2393 = vsel %vm1626, %v2377, %v1996
      %v2394 = vsel %vm1626, %v2378, %v1998
      %v2395 = vsel %vm1626, %v2379, %v2000
      %v2396 = vsel %vm1626, %v2380, %v2002
      %v2397 = vsel %vm1626, %v2381, %v2004
      %v2398 = vsel %vm1626, %v2382, %v2006
      %v2399 = vsel %vm1626, %v2383, %v2008
      %v2400 = vsel %vm1626, %v2384, %v2010
      %v2401 = vsel %vm1626, %v2385, %v2012
      %v2402 = vsel %vm1626, %v2386, %v2014
      %v2403 = vsel %vm1626, %v2387, %v2016
      %v2404 = vsel %vm1626, %v2388, %v2018
      %v2405 = vsel %vm1626, %v2389, %v2020
      %v2406 = vsel %vm1626, %v2390, %v2022
      %v2407 = vsel %vm1643, %v2391, %v2056
      %v2408 = vsel %vm1643, %v2392, %v2058
      %v2409 = vsel %vm1643, %v2393, %v2060
      %v2410 = vsel %vm1643, %v2394, %v2062
      %v2411 = vsel %vm1643, %v2395, %v2064
      %v2412 = vsel %vm1643, %v2396, %v2066
      %v2413 = vsel %vm1643, %v2397, %v2068
      %v2414 = vsel %vm1643, %v2398, %v2070
      %v2415 = vsel %vm1643, %v2399, %v2072
      %v2416 = vsel %vm1643, %v2400, %v2074
      %v2417 = vsel %vm1643, %v2401, %v2076
      %v2418 = vsel %vm1643, %v2402, %v2078
      %v2419 = vsel %vm1643, %v2403, %v2080
      %v2420 = vsel %vm1643, %v2404, %v2082
      %v2421 = vsel %vm1643, %v2405, %v2084
      %v2422 = vsel %vm1643, %v2406, %v2086
      %v2423 = vsel %vm1660, %v2407, %v2120
      %v2424 = vsel %vm1660, %v2408, %v2122
      %v2425 = vsel %vm1660, %v2409, %v2124
      %v2426 = vsel %vm1660, %v2410, %v2126
      %v2427 = vsel %vm1660, %v2411, %v2128
      %v2428 = vsel %vm1660, %v2412, %v2130
      %v2429 = vsel %vm1660, %v2413, %v2132
      %v2430 = vsel %vm1660, %v2414, %v2134
      %v2431 = vsel %vm1660, %v2415, %v2136
      %v2432 = vsel %vm1660, %v2416, %v2138
      %v2433 = vsel %vm1660, %v2417, %v2140
      %v2434 = vsel %vm1660, %v2418, %v2142
      %v2435 = vsel %vm1660, %v2419, %v2144
      %v2436 = vsel %vm1660, %v2420, %v2146
      %v2437 = vsel %vm1660, %v2421, %v2148
      %v2438 = vsel %vm1660, %v2422, %v2150
      %v2439 = vsel %vm1677, %v2423, %v2184
      %v2440 = vsel %vm1677, %v2424, %v2186
      %v2441 = vsel %vm1677, %v2425, %v2188
      %v2442 = vsel %vm1677, %v2426, %v2190
      %v2443 = vsel %vm1677, %v2427, %v2192
      %v2444 = vsel %vm1677, %v2428, %v2194
      %v2445 = vsel %vm1677, %v2429, %v2196
      %v2446 = vsel %vm1677, %v2430, %v2198
      %v2447 = vsel %vm1677, %v2431, %v2200
      %v2448 = vsel %vm1677, %v2432, %v2202
      %v2449 = vsel %vm1677, %v2433, %v2204
      %v2450 = vsel %vm1677, %v2434, %v2206
      %v2451 = vsel %vm1677, %v2435, %v2208
      %v2452 = vsel %vm1677, %v2436, %v2210
      %v2453 = vsel %vm1677, %v2437, %v2212
      %v2454 = vsel %vm1677, %v2438, %v2214
      %v2455 = vsel %vm1694, %v2439, %v2248
      %v2456 = vsel %vm1694, %v2440, %v2250
      %v2457 = vsel %vm1694, %v2441, %v2252
      %v2458 = vsel %vm1694, %v2442, %v2254
      %v2459 = vsel %vm1694, %v2443, %v2256
      %v2460 = vsel %vm1694, %v2444, %v2258
      %v2461 = vsel %vm1694, %v2445, %v2260
      %v2462 = vsel %vm1694, %v2446, %v2262
      %v2463 = vsel %vm1694, %v2447, %v2264
      %v2464 = vsel %vm1694, %v2448, %v2266
      %v2465 = vsel %vm1694, %v2449, %v2268
      %v2466 = vsel %vm1694, %v2450, %v2270
      %v2467 = vsel %vm1694, %v2451, %v2272
      %v2468 = vsel %vm1694, %v2452, %v2274
      %v2469 = vsel %vm1694, %v2453, %v2276
      %v2470 = vsel %vm1694, %v2454, %v2278
      %v2471 = vsel %vm1711, %v2455, %v2312
      %v2472 = vsel %vm1711, %v2456, %v2314
      %v2473 = vsel %vm1711, %v2457, %v2316
      %v2474 = vsel %vm1711, %v2458, %v2318
      %v2475 = vsel %vm1711, %v2459, %v2320
      %v2476 = vsel %vm1711, %v2460, %v2322
      %v2477 = vsel %vm1711, %v2461, %v2324
      %v2478 = vsel %vm1711, %v2462, %v2326
      %v2479 = vsel %vm1711, %v2463, %v2328
      %v2480 = vsel %vm1711, %v2464, %v2330
      %v2481 = vsel %vm1711, %v2465, %v2332
      %v2482 = vsel %vm1711, %v2466, %v2334
      %v2483 = vsel %vm1711, %v2467, %v2336
      %v2484 = vsel %vm1711, %v2468, %v2338
      %v2485 = vsel %vm1711, %v2469, %v2340
      %v2486 = vsel %vm1711, %v2470, %v2342
      %2503 = vrot.lane.b32.xlu0 %v2471, 64
      %v2504 = vpop.permute.xlu0 %2503
      %2505 = vrot.lane.b32.xlu0 %v2472, 64
      %v2506 = vpop.permute.xlu0 %2505
      %2507 = vrot.lane.b32.xlu0 %v2473, 64
      %v2508 = vpop.permute.xlu0 %2507
      %2509 = vrot.lane.b32.xlu0 %v2474, 64
      %v2510 = vpop.permute.xlu0 %2509
      %2511 = vrot.lane.b32.xlu0 %v2475, 64
      %v2512 = vpop.permute.xlu0 %2511
      %2513 = vrot.lane.b32.xlu0 %v2476, 64
      %v2514 = vpop.permute.xlu0 %2513
      %2515 = vrot.lane.b32.xlu0 %v2477, 64
      %v2516 = vpop.permute.xlu0 %2515
      %2517 = vrot.lane.b32.xlu0 %v2478, 64
      %v2518 = vpop.permute.xlu0 %2517
      %2519 = vrot.lane.b32.xlu0 %v2479, 64
      %v2520 = vpop.permute.xlu0 %2519
      %2521 = vrot.lane.b32.xlu0 %v2480, 64
      %v2522 = vpop.permute.xlu0 %2521
      %2523 = vrot.lane.b32.xlu0 %v2481, 64
      %v2524 = vpop.permute.xlu0 %2523
      %2525 = vrot.lane.b32.xlu0 %v2482, 64
      %v2526 = vpop.permute.xlu0 %2525
      %2527 = vrot.lane.b32.xlu0 %v2483, 64
      %v2528 = vpop.permute.xlu0 %2527
      %2529 = vrot.lane.b32.xlu0 %v2484, 64
      %v2530 = vpop.permute.xlu0 %2529
      %2531 = vrot.lane.b32.xlu0 %v2485, 64
      %v2532 = vpop.permute.xlu0 %2531
      %2533 = vrot.lane.b32.xlu0 %v2486, 64
      %v2534 = vpop.permute.xlu0 %2533
      %vm2551 = vcmask 523264
      %v2552 = vsel %vm2551, %v1831, %v2504
      %v2553 = vsel %vm2551, %v1832, %v2506
      %v2554 = vsel %vm2551, %v1833, %v2508
      %v2555 = vsel %vm2551, %v1834, %v2510
      %v2556 = vsel %vm2551, %v1835, %v2512
      %v2557 = vsel %vm2551, %v1836, %v2514
      %v2558 = vsel %vm2551, %v1837, %v2516
      %v2559 = vsel %vm2551, %v1838, %v2518
      %v2560 = vsel %vm2551, %v1839, %v2520
      %v2561 = vsel %vm2551, %v1840, %v2522
      %v2562 = vsel %vm2551, %v1841, %v2524
      %v2563 = vsel %vm2551, %v1842, %v2526
      %v2564 = vsel %vm2551, %v1843, %v2528
      %v2565 = vsel %vm2551, %v1844, %v2530
      %v2566 = vsel %vm2551, %v1845, %v2532
      %v2567 = vsel %vm2551, %v1846, %v2534
      %v2568 = vld [vmem:[%s1] sm:$0xff]
      %v2569 = vld [vmem:[%s1 + $0x8] sm:$0xff]
      %v2570 = vld [vmem:[%s1 + $0x10] sm:$0xff]
      %v2571 = vld [vmem:[%s1 + $0x18] sm:$0xff]
      %v2572 = vld [vmem:[%s1 + $0x20] sm:$0xff]
      %v2573 = vld [vmem:[%s1 + $0x28] sm:$0xff]
      %v2574 = vld [vmem:[%s1 + $0x30] sm:$0xff]
      %v2575 = vld [vmem:[%s1 + $0x38] sm:$0xff]
      %v2576 = vld [vmem:[%s1 + $0x40] sm:$0xff]
      %v2577 = vld [vmem:[%s1 + $0x48] sm:$0xff]
      %v2578 = vld [vmem:[%s1 + $0x50] sm:$0xff]
      %v2579 = vld [vmem:[%s1 + $0x58] sm:$0xff]
      %v2580 = vld [vmem:[%s1 + $0x60] sm:$0xf]
      %vm2581 = vcmask 818176
      %v2583 = vsel %vm2581, %v2552, 0
      %v2586 = vsel %vm2581, %v2553, 0
      %v2589 = vsel %vm2581, %v2554, 0
      %v2592 = vsel %vm2581, %v2555, 0
      %v2595 = vsel %vm2581, %v2556, 0
      %v2598 = vsel %vm2581, %v2557, 0
      %v2601 = vsel %vm2581, %v2558, 0
      %v2604 = vsel %vm2581, %v2559, 0
      %v2607 = vsel %vm2581, %v2560, 0
      %v2610 = vsel %vm2581, %v2561, 0
      %v2613 = vsel %vm2581, %v2562, 0
      %v2616 = vsel %vm2581, %v2563, 0
      %v2619 = vsel %vm2581, %v2564, 0
      %v2622 = vsel %vm2581, %v2565, 0
      %v2625 = vsel %vm2581, %v2566, 0
      %v2628 = vsel %vm2581, %v2567, 0
      %vm2630 = vcmask 1043456
      %v2632 = vsel %vm2630, %v2580, 0
      %2634 = vmatprep.subr.mxu0 0.0
      %2635 = vmatpush1.msra.mxu0 0.0
      %2636 = vmatprep.subr.mxu0 0.0
      %2637 = vmatpush1.msra.mxu0 0.0
      %2638 = vmatprep.subr.mxu0 0.0
      %2639 = vmatpush1.msra.mxu0 0.0
      %2640 = vmatprep.subr.mxu0 0.0
      %2641 = vmatpush1.msra.mxu0 %v2632
      %2642 = vmatprep.subr.mxu0 0.0
      %2643 = vmatpush1.msra.mxu0 %v2579
      %2644 = vmatprep.subr.mxu0 0.0
      %2645 = vmatpush1.msra.mxu0 %v2578
      %2646 = vmatprep.subr.mxu0 0.0
      %2647 = vmatpush1.msra.mxu0 %v2577
      %2648 = vmatprep.subr.mxu0 0.0
      %2649 = vmatpush1.msra.mxu0 %v2576
      %2650 = vmatprep.subr.mxu0 0.0
      %2651 = vmatpush1.msra.mxu0 %v2575
      %2652 = vmatprep.subr.mxu0 0.0
      %2653 = vmatpush1.msra.mxu0 %v2574
      %2654 = vmatprep.subr.mxu0 0.0
      %2655 = vmatpush1.msra.mxu0 %v2573
      %2656 = vmatprep.subr.mxu0 0.0
      %2657 = vmatpush1.msra.mxu0 %v2572
      %2658 = vmatprep.subr.mxu0 0.0
      %2659 = vmatpush1.msra.mxu0 %v2571
      %2660 = vmatprep.subr.mxu0 0.0
      %2661 = vmatpush1.msra.mxu0 %v2570
      %2662 = vmatprep.subr.mxu0 0.0
      %2663 = vmatpush1.msra.mxu0 %v2569
      %2664 = vmatprep.subr.mxu0 0.0
      %2665 = vmatpush1.msra.mxu0 %v2568
      %2666 = vmatprep.subr.mxu0 0.0
      %2667 = vmatpush2.msra.mxu0 0.0
      %2668 = vmatprep.subr.mxu0 0.0
      %2669 = vmatpush2.msra.mxu0 0.0
      %2670 = vmatprep.subr.mxu0 0.0
      %2671 = vmatpush2.msra.mxu0 0.0
      %2672 = vmatprep.subr.mxu0 0.0
      %2673 = vmatpush2.msra.mxu0 0.0
      %2674 = vmatprep.subr.mxu0 0.0
      %2675 = vmatpush2.msra.mxu0 0.0
      %2676 = vmatprep.subr.mxu0 0.0
      %2677 = vmatpush2.msra.mxu0 0.0
      %2678 = vmatprep.subr.mxu0 0.0
      %2679 = vmatpush2.msra.mxu0 0.0
      %2680 = vmatprep.subr.mxu0 0.0
      %2681 = vmatpush2.msra.mxu0 0.0
      %2682 = vmatprep.subr.mxu0 0.0
      %2683 = vmatpush2.msra.mxu0 0.0
      %2684 = vmatprep.subr.mxu0 0.0
      %2685 = vmatpush2.msra.mxu0 0.0
      %2686 = vmatprep.subr.mxu0 0.0
      %2687 = vmatpush2.msra.mxu0 0.0
      %2688 = vmatprep.subr.mxu0 0.0
      %2689 = vmatpush2.msra.mxu0 0.0
      %2690 = vmatprep.subr.mxu0 0.0
      %2691 = vmatpush2.msra.mxu0 0.0
      %2692 = vmatprep.subr.mxu0 0.0
      %2693 = vmatpush2.msra.mxu0 0.0
      %2694 = vmatprep.subr.mxu0 0.0
      %2695 = vmatpush2.msra.mxu0 0.0
      %2696 = vmatprep.subr.mxu0 0.0
      %2697 = vmatpush2.msra.mxu0 0.0
      %2698 = vmatprep.mubr.f32.mxu0 0.0
      %2699 = vmatmul.mubr.f32.gmra.mxu0 %v2583
      %v2700 = vpop.f32.mrf.mxu0
      %v2701 = vadd.f32 0.0, %v2700
      %v2702 = vpop.f32.mrf.mxu0
      %2703 = vmatprep.mubr.f32.mxu0 0.0
      %2704 = vmatmul.mubr.f32.gmra.mxu0 %v2586
      %v2705 = vpop.f32.mrf.mxu0
      %v2706 = vadd.f32 0.0, %v2705
      %v2707 = vpop.f32.mrf.mxu0
      %2708 = vmatprep.mubr.f32.mxu0 0.0
      %2709 = vmatmul.mubr.f32.gmra.mxu0 %v2589
      %v2710 = vpop.f32.mrf.mxu0
      %v2711 = vadd.f32 0.0, %v2710
      %v2712 = vpop.f32.mrf.mxu0
      %2713 = vmatprep.mubr.f32.mxu0 0.0
      %2714 = vmatmul.mubr.f32.gmra.mxu0 %v2592
      %v2715 = vpop.f32.mrf.mxu0
      %v2716 = vadd.f32 0.0, %v2715
      %v2717 = vpop.f32.mrf.mxu0
      %2718 = vmatprep.mubr.f32.mxu0 0.0
      %2719 = vmatmul.mubr.f32.gmra.mxu0 %v2595
      %v2720 = vpop.f32.mrf.mxu0
      %v2721 = vadd.f32 0.0, %v2720
      %v2722 = vpop.f32.mrf.mxu0
      %2723 = vmatprep.mubr.f32.mxu0 0.0
      %2724 = vmatmul.mubr.f32.gmra.mxu0 %v2598
      %v2725 = vpop.f32.mrf.mxu0
      %v2726 = vadd.f32 0.0, %v2725
      %v2727 = vpop.f32.mrf.mxu0
      %2728 = vmatprep.mubr.f32.mxu0 0.0
      %2729 = vmatmul.mubr.f32.gmra.mxu0 %v2601
      %v2730 = vpop.f32.mrf.mxu0
      %v2731 = vadd.f32 0.0, %v2730
      %v2732 = vpop.f32.mrf.mxu0
      %2733 = vmatprep.mubr.f32.mxu0 0.0
      %2734 = vmatmul.mubr.f32.gmra.mxu0 %v2604
      %v2735 = vpop.f32.mrf.mxu0
      %v2736 = vadd.f32 0.0, %v2735
      %v2737 = vpop.f32.mrf.mxu0
      %2738 = vmatprep.mubr.f32.mxu0 0.0
      %2739 = vmatmul.mubr.f32.gmra.mxu0 %v2607
      %v2740 = vpop.f32.mrf.mxu0
      %v2741 = vadd.f32 0.0, %v2740
      %v2742 = vpop.f32.mrf.mxu0
      %2743 = vmatprep.mubr.f32.mxu0 0.0
      %2744 = vmatmul.mubr.f32.gmra.mxu0 %v2610
      %v2745 = vpop.f32.mrf.mxu0
      %v2746 = vadd.f32 0.0, %v2745
      %v2747 = vpop.f32.mrf.mxu0
      %2748 = vmatprep.mubr.f32.mxu0 0.0
      %2749 = vmatmul.mubr.f32.gmra.mxu0 %v2613
      %v2750 = vpop.f32.mrf.mxu0
      %v2751 = vadd.f32 0.0, %v2750
      %v2752 = vpop.f32.mrf.mxu0
      %2753 = vmatprep.mubr.f32.mxu0 0.0
      %2754 = vmatmul.mubr.f32.gmra.mxu0 %v2616
      %v2755 = vpop.f32.mrf.mxu0
      %v2756 = vadd.f32 0.0, %v2755
      %v2757 = vpop.f32.mrf.mxu0
      %2758 = vmatprep.mubr.f32.mxu0 0.0
      %2759 = vmatmul.mubr.f32.gmra.mxu0 %v2619
      %v2760 = vpop.f32.mrf.mxu0
      %v2761 = vadd.f32 0.0, %v2760
      %v2762 = vpop.f32.mrf.mxu0
      %2763 = vmatprep.mubr.f32.mxu0 0.0
      %2764 = vmatmul.mubr.f32.gmra.mxu0 %v2622
      %v2765 = vpop.f32.mrf.mxu0
      %v2766 = vadd.f32 0.0, %v2765
      %v2767 = vpop.f32.mrf.mxu0
      %2768 = vmatprep.mubr.f32.mxu0 0.0
      %2769 = vmatmul.mubr.f32.gmra.mxu0 %v2625
      %v2770 = vpop.f32.mrf.mxu0
      %v2771 = vadd.f32 0.0, %v2770
      %v2772 = vpop.f32.mrf.mxu0
      %2773 = vmatprep.mubr.f32.mxu0 0.0
      %2774 = vmatmul.mubr.f32.gmra.mxu0 %v2628
      %v2775 = vpop.f32.mrf.mxu0
      %v2776 = vadd.f32 0.0, %v2775
      %v2777 = vpop.f32.mrf.mxu0
      %2778 = vdwg.mxu0
      %v2779 = vadd.f32 %v2701, %v2706
      %v2780 = vadd.f32 %v2779, %v2711
      %v2781 = vadd.f32 %v2780, %v2716
      %v2782 = vadd.f32 %v2781, %v2721
      %v2783 = vadd.f32 %v2782, %v2726
      %v2784 = vadd.f32 %v2783, %v2731
      %v2785 = vadd.f32 %v2784, %v2736
      %v2786 = vadd.f32 %v2785, %v2741
      %v2787 = vadd.f32 %v2786, %v2746
      %v2788 = vadd.f32 %v2787, %v2751
      %v2789 = vadd.f32 %v2788, %v2756
      %v2790 = vadd.f32 %v2789, %v2761
      %v2791 = vadd.f32 %v2790, %v2766
      %v2792 = vadd.f32 %v2791, %v2771
      %v2793 = vadd.f32 %v2792, %v2776
      %v2794 = vrot.slane %v2793, 4
      %v2795 = vadd.f32 %v2793, %v2794
      %v2796 = vrot.slane %v2795, 2
      %v2797 = vadd.f32 %v2795, %v2796
      %v2798 = vrot.slane %v2797, 1
      %v2799 = vadd.f32 %v2797, %v2798
      %v2800 = vmul.f32 %v2701, %v2701
      %v2801 = vmul.f32 %v2706, %v2706
      %v2802 = vmul.f32 %v2711, %v2711
      %v2803 = vmul.f32 %v2716, %v2716
      %v2804 = vmul.f32 %v2721, %v2721
      %v2805 = vmul.f32 %v2726, %v2726
      %v2806 = vmul.f32 %v2731, %v2731
      %v2807 = vmul.f32 %v2736, %v2736
      %v2808 = vmul.f32 %v2741, %v2741
      %v2809 = vmul.f32 %v2746, %v2746
      %v2810 = vmul.f32 %v2751, %v2751
      %v2811 = vmul.f32 %v2756, %v2756
      %v2812 = vmul.f32 %v2761, %v2761
      %v2813 = vmul.f32 %v2766, %v2766
      %v2814 = vmul.f32 %v2771, %v2771
      %v2815 = vmul.f32 %v2776, %v2776
      %v2816 = vadd.f32 %v2800, %v2801
      %v2817 = vadd.f32 %v2816, %v2802
      %v2818 = vadd.f32 %v2817, %v2803
      %v2819 = vadd.f32 %v2818, %v2804
      %v2820 = vadd.f32 %v2819, %v2805
      %v2821 = vadd.f32 %v2820, %v2806
      %v2822 = vadd.f32 %v2821, %v2807
      %v2823 = vadd.f32 %v2822, %v2808
      %v2824 = vadd.f32 %v2823, %v2809
      %v2825 = vadd.f32 %v2824, %v2810
      %v2826 = vadd.f32 %v2825, %v2811
      %v2827 = vadd.f32 %v2826, %v2812
      %v2828 = vadd.f32 %v2827, %v2813
      %v2829 = vadd.f32 %v2828, %v2814
      %v2830 = vadd.f32 %v2829, %v2815
      %v2831 = vrot.slane %v2830, 4
      %v2832 = vadd.f32 %v2830, %v2831
      %v2833 = vrot.slane %v2832, 2
      %v2834 = vadd.f32 %v2832, %v2833
      %v2835 = vrot.slane %v2834, 1
      %v2836 = vadd.f32 %v2834, %v2835
      %2837 = vst [vmem:[%s207] sm:$0xff] %v2701
      %2838 = vst [vmem:[%s207 + $0x8] sm:$0xff] %v2706
      %2839 = vst [vmem:[%s207 + $0x10] sm:$0xff] %v2711
      %2840 = vst [vmem:[%s207 + $0x18] sm:$0xff] %v2716
      %2841 = vst [vmem:[%s207 + $0x20] sm:$0xff] %v2721
      %2842 = vst [vmem:[%s207 + $0x28] sm:$0xff] %v2726
      %2843 = vst [vmem:[%s207 + $0x30] sm:$0xff] %v2731
      %2844 = vst [vmem:[%s207 + $0x38] sm:$0xff] %v2736
      %2845 = vst [vmem:[%s207 + $0x40] sm:$0xff] %v2741
      %2846 = vst [vmem:[%s207 + $0x48] sm:$0xff] %v2746
      %2847 = vst [vmem:[%s207 + $0x50] sm:$0xff] %v2751
      %2848 = vst [vmem:[%s207 + $0x58] sm:$0xff] %v2756
      %2849 = vst [vmem:[%s207 + $0x60] sm:$0xff] %v2761
      %2850 = vst [vmem:[%s207 + $0x68] sm:$0xff] %v2766
      %2851 = vst [vmem:[%s207 + $0x70] sm:$0xff] %v2771
      %2852 = vst [vmem:[%s207 + $0x78] sm:$0xff] %v2776
      %vm2853 = vcmask 1040384
      %v2854 = vsel %vm2853, %v2799, %v2836
      %2855 = vst [vmem:[%s216] sm:$0x3] %v2854
      %s2856 = smul.u32 8, %s20
      %p2857 = scmp.lt.s32.totalorder %s19, 1
      %s2858 = scalar_select %p2857, %s19, 1
      %p2859 = scmp.lt.s32.totalorder %s2856, 15
      %s2860 = scalar_select %p2859, %s2856, 15
      %s2861 = smul.addr %s2860, 2
      %s2862 = smul.addr %s2858, 32
      %s2863 = sadd.s32 %s2861, %s2862
      %s2864 = smul.addr %s2863, 8
      %s2865 = scalar_lea.vmem %s2, %s2864
      %p2866 = scmp.lt.s32.totalorder %s19, 1
      %s2867 = scalar_select %p2866, %s19, 1
      %p2868 = scmp.lt.s32.totalorder %s20, 1
      %s2869 = scalar_select %p2868, %s20, 1
      %s2870 = smul.addr %s2867, 2
      %s2871 = sadd.s32 %s2869, %s2870
      %s2872 = smul.addr %s2871, 2
      %s2873 = scalar_lea.vmem %s3, %s2872
      // Predicated region
      $region29: #{conv2d_block_forward.2} parent=27 // pred_check
        %p2874 = pneg %p94
      $region30: #{conv2d_block_forward.2} parent=27 // pred_check_branch
        %2876 = sbr.rel (%p2874) target = $region32
      $region31: #{conv2d_block_forward.2} parent=27 // pred_region
        %s2877 = smul.u32 8, %s20
      $region32: #{conv2d_block_forward.2} parent=27 // pred_fallthru
        _
      // Predicated region
      $region33: #{conv2d_block_forward.2} parent=27 // pred_check
        %p2878 = pneg %p122
      $region34: #{conv2d_block_forward.2} parent=27 // pred_check_branch
        %2880 = sbr.rel (%p2878) target = $region36
      $region35: #{conv2d_block_forward.2} parent=27 // pred_region
        _
      $region36: #{conv2d_block_forward.2} parent=27 // pred_fallthru
        _
    $region28: #{conv2d_block_forward.2} parent=5 // pred_fallthru
      _
    %p2881 = scmp.le.s32.totalorder 2, %s10
    // Predicated region
    $region37: #{conv2d_block_forward.2} parent=5 // pred_check
      %p2882 = pneg %p2881
    $region38: #{conv2d_block_forward.2} parent=5 // pred_check_branch
      %2884 = sbr.rel (%p2882) target = $region40
    $region39: #{conv2d_block_forward.2} parent=5 // pred_region
      %s2885 = ssub.s32 %s10, 2
      // Predicated region
      $region41: #{conv2d_block_forward.2} parent=39 // pred_check
        %p2886 = pneg %p100
      $region42: #{conv2d_block_forward.2} parent=39 // pred_check_branch
        %2888 = sbr.rel (%p2886) target = $region44
      $region43: #{conv2d_block_forward.2} parent=39 // pred_region
        %s2889 = smul.u32 8, %s22
        %p2890 = scmp.lt.s32.totalorder %s21, 1
        %s2891 = scalar_select %p2890, %s21, 1
        %p2892 = scmp.lt.s32.totalorder %s2889, 15
        %s2893 = scalar_select %p2892, %s2889, 15
        %s2894 = smul.addr %s2893, 2
        %s2895 = smul.addr %s2891, 32
        %s2896 = sadd.s32 %s2894, %s2895
        %s2897 = smul.addr %s2896, 8
        %s2898 = scalar_lea.vmem %s2, %s2897
      $region44: #{conv2d_block_forward.2} parent=39 // pred_fallthru
        _
      // Predicated region
      $region45: #{conv2d_block_forward.2} parent=39 // pred_check
        %p2899 = pneg %p128
      $region46: #{conv2d_block_forward.2} parent=39 // pred_check_branch
        %2901 = sbr.rel (%p2899) target = $region48
      $region47: #{conv2d_block_forward.2} parent=39 // pred_region
        %p2902 = scmp.lt.s32.totalorder %s21, 1
        %s2903 = scalar_select %p2902, %s21, 1
        %p2904 = scmp.lt.s32.totalorder %s22, 1
        %s2905 = scalar_select %p2904, %s22, 1
        %s2906 = smul.addr %s2903, 2
        %s2907 = sadd.s32 %s2905, %s2906
        %s2908 = smul.addr %s2907, 2
        %s2909 = scalar_lea.vmem %s3, %s2908
      $region48: #{conv2d_block_forward.2} parent=39 // pred_fallthru
        _
    $region40: #{conv2d_block_forward.2} parent=5 // pred_fallthru
      _
  $region6: #{conv2d_block_forward.2} parent=0 // loop_footer
    %s14 = sadd.s32 1, %s10
  $region7: #{conv2d_block_forward.2} parent=0 // loop_footer_branch
    %9 = sbr.rel target = $region3
  $region8: #{conv2d_block_forward.2} parent=0 // loop_exit
    _

</llo_original>
